<compile_context>
chip_gen: v7x
topology: tpu7x:2x2x1
jax: 0.10.0
libtpu: 0.0.40
codegen_flags: <defaults>
</compile_context>

<pallas_src>
import math

import jax
import jax.numpy as jnp
from jax.experimental import pallas as pl
from jax.experimental.pallas import tpu as pltpu

MODEL_DIM = 32
NUM_HEADS = 4
HEAD_DIM = MODEL_DIM // NUM_HEADS
FFN_DIM = 64
LN_EPS = 1e-5


def _layernorm(x, gamma, beta):
    mu = jnp.mean(x, axis=-1, keepdims=True)
    var = jnp.mean((x - mu) ** 2, axis=-1, keepdims=True)
    return (x - mu) * jax.lax.rsqrt(var + LN_EPS) * gamma + beta


def encoder_block_kernel(
    x_ref,
    ln1g_ref, ln1b_ref,
    wqkv_ref, bqkv_ref, wo_ref, bo_ref,
    ln2g_ref, ln2b_ref,
    w1_ref, b1_ref, w2_ref, b2_ref,
    o_ref,
):
    Bt, S, D = x_ref.shape

    # Collapse (Bt, S, D) -> (Bt*S, D) for all the dense layers (layout-free).
    x = x_ref[...].reshape(Bt * S, D)
    residual = x

    # ---- LayerNorm 1 -------------------------------------------------------
    xn = _layernorm(x, ln1g_ref[0], ln1b_ref[0])

    # ---- Fused QKV projection ----------------------------------------------
    qkv = jnp.dot(xn, wqkv_ref[...], preferred_element_type=jnp.float32) + bqkv_ref[0]
    q = qkv[:, 0 * D:1 * D].reshape(Bt, S, D)
    k = qkv[:, 1 * D:2 * D].reshape(Bt, S, D)
    v = qkv[:, 2 * D:3 * D].reshape(Bt, S, D)

    # ---- Multi-head self-attention (head isolation via lane masks) ---------
    # TODO(synk): key-padding mask support (forward is called with pad=None here)
    scale = 1.0 / math.sqrt(HEAD_DIM)
    lane = jax.lax.broadcasted_iota(jnp.int32, (1, 1, D), 2)

    attn = jnp.zeros((Bt, S, D), jnp.float32)
    for h in range(NUM_HEADS):  # static unroll, no lane slicing / concat
        lo = h * HEAD_DIM
        m = jnp.where((lane >= lo) & (lane < lo + HEAD_DIM), 1.0, 0.0)
        # Scores restricted to head h's lanes of the contraction dim.
        s = jnp.einsum("bqd,bkd->bqk", q * m, k,
                       preferred_element_type=jnp.float32) * scale        # (Bt,S,S)
        s = s - jnp.max(s, axis=-1, keepdims=True)
        p = jnp.exp(s)
        p = p * pl.reciprocal(jnp.sum(p, axis=-1, keepdims=True), approx=True)
        # P @ (V masked to head h's lanes) lands the result in the right lanes.
        attn = attn + jnp.einsum("bqk,bkd->bqd", p, v * m,
                                 preferred_element_type=jnp.float32)      # (Bt,S,D)

    attn2 = attn.reshape(Bt * S, D)
    attn2 = jnp.dot(attn2, wo_ref[...], preferred_element_type=jnp.float32) + bo_ref[0]

    x1 = residual + attn2

    # ---- LayerNorm 2 + FFN --------------------------------------------------
    xn2 = _layernorm(x1, ln2g_ref[0], ln2b_ref[0])
    h1 = jnp.dot(xn2, w1_ref[...], preferred_element_type=jnp.float32) + b1_ref[0]
    h1 = jnp.maximum(h1, 0.0)
    y = jnp.dot(h1, w2_ref[...], preferred_element_type=jnp.float32) + b2_ref[0]

    # Single full-block store per grid step.
    o_ref[...] = (x1 + y).reshape(Bt, S, D)


def encoder_block(x, params, *, batch_tile=None):
    B, S, D = x.shape
    assert D == MODEL_DIM
    # Default: whole batch in one grid step (best on single-TC v5e/v6e).
    # On v7x pass batch_tile = B // 2 so the 2-step 'parallel' grid uses both TCs.
    if batch_tile is None:
        batch_tile = B
    assert B % batch_tile == 0
    n_steps = B // batch_tile

    # Fuse the QKV weights/biases once in the wrapper (trace-time concat).
    wqkv = jnp.concatenate([params["wq"], params["wk"], params["wv"]], axis=1)  # (D, 3D)
    bqkv = jnp.concatenate([params["bq"], params["bk"], params["bv"]], axis=1)  # (1, 3D)

    def full2d(shape):
        return pl.BlockSpec(shape, lambda b: (0, 0))

    in_specs = [
        pl.BlockSpec((batch_tile, S, D), lambda b: (b, 0, 0)),   # x
        full2d((1, D)), full2d((1, D)),                          # ln1 gamma/beta
        full2d((D, 3 * D)), full2d((1, 3 * D)),                  # Wqkv, bqkv (fused)
        full2d((D, D)), full2d((1, D)),                          # Wo, bo
        full2d((1, D)), full2d((1, D)),                          # ln2 gamma/beta
        full2d((D, FFN_DIM)), full2d((1, FFN_DIM)),              # W1, b1
        full2d((FFN_DIM, D)), full2d((1, D)),                    # W2, b2
    ]

    return pl.pallas_call(
        encoder_block_kernel,
        out_shape=jax.ShapeDtypeStruct((B, S, D), x.dtype),
        grid_spec=pltpu.PrefetchScalarGridSpec(
            num_scalar_prefetch=0,
            grid=(n_steps,),
            in_specs=in_specs,
            out_specs=pl.BlockSpec((batch_tile, S, D), lambda b: (b, 0, 0)),
        ),
        compiler_params=pltpu.CompilerParams(
            dimension_semantics=("parallel",)),
    )(
        x,
        params["ln1_g"], params["ln1_b"],
        wqkv, bqkv, params["wo"], params["bo"],
        params["ln2_g"], params["ln2_b"],
        params["w1"], params["b1"], params["w2"], params["b2"],
    )


def encoder_block_ref(x, p):
    """Plain-JAX reference for correctness checking."""
    def ln(v, g, b):
        mu = jnp.mean(v, -1, keepdims=True)
        var = jnp.mean((v - mu) ** 2, -1, keepdims=True)
        return (v - mu) * jax.lax.rsqrt(var + LN_EPS) * g + b

    B, S, D = x.shape
    res = x
    xn = ln(x, p["ln1_g"][0], p["ln1_b"][0])
    q = xn @ p["wq"] + p["bq"][0]
    k = xn @ p["wk"] + p["bk"][0]
    v = xn @ p["wv"] + p["bv"][0]
    qh = q.reshape(B, S, NUM_HEADS, HEAD_DIM).transpose(0, 2, 1, 3)
    kh = k.reshape(B, S, NUM_HEADS, HEAD_DIM).transpose(0, 2, 1, 3)
    vh = v.reshape(B, S, NUM_HEADS, HEAD_DIM).transpose(0, 2, 1, 3)
    s = jnp.einsum("bhqd,bhkd->bhqk", qh, kh) / math.sqrt(HEAD_DIM)
    pattn = jax.nn.softmax(s, axis=-1)
    o = jnp.einsum("bhqk,bhkd->bhqd", pattn, vh)
    o = o.transpose(0, 2, 1, 3).reshape(B, S, D)
    o = o @ p["wo"] + p["bo"][0]
    x1 = res + o
    xn2 = ln(x1, p["ln2_g"][0], p["ln2_b"][0])
    h = jnp.maximum(xn2 @ p["w1"] + p["b1"][0], 0.0)
    return x1 + (h @ p["w2"] + p["b2"][0])


def init_params(key):
    ks = jax.random.split(key, 8)
    sc = 0.1
    return {
        "ln1_g": jnp.ones((1, MODEL_DIM), jnp.float32),
        "ln1_b": jnp.zeros((1, MODEL_DIM), jnp.float32),
        "wq": sc * jax.random.normal(ks[0], (MODEL_DIM, MODEL_DIM), jnp.float32),
        "bq": jnp.zeros((1, MODEL_DIM), jnp.float32),
        "wk": sc * jax.random.normal(ks[1], (MODEL_DIM, MODEL_DIM), jnp.float32),
        "bk": jnp.zeros((1, MODEL_DIM), jnp.float32),
        "wv": sc * jax.random.normal(ks[2], (MODEL_DIM, MODEL_DIM), jnp.float32),
        "bv": jnp.zeros((1, MODEL_DIM), jnp.float32),
        "wo": sc * jax.random.normal(ks[3], (MODEL_DIM, MODEL_DIM), jnp.float32),
        "bo": jnp.zeros((1, MODEL_DIM), jnp.float32),
        "ln2_g": jnp.ones((1, MODEL_DIM), jnp.float32),
        "ln2_b": jnp.zeros((1, MODEL_DIM), jnp.float32),
        "w1": sc * jax.random.normal(ks[4], (MODEL_DIM, FFN_DIM), jnp.float32),
        "b1": 0.01 * jnp.ones((1, FFN_DIM), jnp.float32),
        "w2": sc * jax.random.normal(ks[5], (FFN_DIM, MODEL_DIM), jnp.float32),
        "b2": 0.01 * jnp.ones((1, MODEL_DIM), jnp.float32),
    }


if __name__ == "__main__":
    key = jax.random.PRNGKey(0)
    kx, kp = jax.random.split(key)
    B, S = 2, 8
    x = jax.random.normal(kx, (B, S, MODEL_DIM), jnp.float32)
    params = init_params(kp)

    out = encoder_block(x, params)
    out = jax.block_until_ready(out)

    ref = encoder_block_ref(x, params)
    assert out.shape == (B, S, MODEL_DIM)
    # Tolerance slightly loosened vs. 1e-4 because of the approx (EUP) reciprocal
    # in the softmax normalization.
    assert jnp.allclose(out, ref, atol=1e-3, rtol=1e-3), \
        f"max err {jnp.max(jnp.abs(out - ref))}"

    print("KERNEL_OK")
</pallas_src>

<mosaic_0001>
module attributes {stable_mosaic.version = 11 : i64} {
  func.func @encoder_block_kernel(%arg0: i32, %arg1: memref<2x8x32xf32, #tpu.memory_space<vmem>>, %arg2: memref<1x32xf32, #tpu.memory_space<vmem>>, %arg3: memref<1x32xf32, #tpu.memory_space<vmem>>, %arg4: memref<32x96xf32, #tpu.memory_space<vmem>>, %arg5: memref<1x96xf32, #tpu.memory_space<vmem>>, %arg6: memref<32x32xf32, #tpu.memory_space<vmem>>, %arg7: memref<1x32xf32, #tpu.memory_space<vmem>>, %arg8: memref<1x32xf32, #tpu.memory_space<vmem>>, %arg9: memref<1x32xf32, #tpu.memory_space<vmem>>, %arg10: memref<32x64xf32, #tpu.memory_space<vmem>>, %arg11: memref<1x64xf32, #tpu.memory_space<vmem>>, %arg12: memref<64x32xf32, #tpu.memory_space<vmem>>, %arg13: memref<1x32xf32, #tpu.memory_space<vmem>>, %arg14: memref<2x8x32xf32, #tpu.memory_space<vmem>>) attributes {dimension_semantics = [#tpu.dimension_semantics<parallel>], iteration_bounds = array<i64: 1>, scalar_prefetch = 0 : i64, scratch_operands = 0 : i64, tpu.core_type = #tpu.core_type<tc>, window_params = [{transform_indices = @transform_0, window_bounds = array<i64: 2, 8, 32>}, {pipeline_mode = #tpu.pipeline_mode<synchronous>, transform_indices = @transform_1, window_bounds = array<i64: 1, 32>}, {pipeline_mode = #tpu.pipeline_mode<synchronous>, transform_indices = @transform_2, window_bounds = array<i64: 1, 32>}, {pipeline_mode = #tpu.pipeline_mode<synchronous>, transform_indices = @transform_3, window_bounds = array<i64: 32, 96>}, {pipeline_mode = #tpu.pipeline_mode<synchronous>, transform_indices = @transform_4, window_bounds = array<i64: 1, 96>}, {pipeline_mode = #tpu.pipeline_mode<synchronous>, transform_indices = @transform_5, window_bounds = array<i64: 32, 32>}, {pipeline_mode = #tpu.pipeline_mode<synchronous>, transform_indices = @transform_6, window_bounds = array<i64: 1, 32>}, {pipeline_mode = #tpu.pipeline_mode<synchronous>, transform_indices = @transform_7, window_bounds = array<i64: 1, 32>}, {pipeline_mode = #tpu.pipeline_mode<synchronous>, transform_indices = @transform_8, window_bounds = array<i64: 1, 32>}, {pipeline_mode = #tpu.pipeline_mode<synchronous>, transform_indices = @transform_9, window_bounds = array<i64: 32, 64>}, {pipeline_mode = #tpu.pipeline_mode<synchronous>, transform_indices = @transform_10, window_bounds = array<i64: 1, 64>}, {pipeline_mode = #tpu.pipeline_mode<synchronous>, transform_indices = @transform_11, window_bounds = array<i64: 64, 32>}, {pipeline_mode = #tpu.pipeline_mode<synchronous>, transform_indices = @transform_12, window_bounds = array<i64: 1, 32>}, {transform_indices = @transform_13, window_bounds = array<i64: 2, 8, 32>}]} {
    %c0 = arith.constant 0 : index
    %c0_0 = arith.constant 0 : index
    %c0_1 = arith.constant 0 : index
    %0 = vector.load %arg1[%c0, %c0_0, %c0_1] : memref<2x8x32xf32, #tpu.memory_space<vmem>>, vector<2x8x32xf32>
    %1 = vector.shape_cast %0 : vector<2x8x32xf32> to vector<16x32xf32>
    %c0_2 = arith.constant 0 : index
    %c0_3 = arith.constant 0 : index
    %2 = vector.load %arg2[%c0_2, %c0_3] : memref<1x32xf32, #tpu.memory_space<vmem>>, vector<1x32xf32>
    %3 = vector.shape_cast %2 : vector<1x32xf32> to vector<32xf32>
    %c0_4 = arith.constant 0 : index
    %c0_5 = arith.constant 0 : index
    %4 = vector.load %arg3[%c0_4, %c0_5] : memref<1x32xf32, #tpu.memory_space<vmem>>, vector<1x32xf32>
    %5 = vector.shape_cast %4 : vector<1x32xf32> to vector<32xf32>
    %cst = arith.constant dense<0.000000e+00> : vector<16xf32>
    %6 = vector.multi_reduction <add>, %1, %cst [1] : vector<16x32xf32> to vector<16xf32>
    %7 = vector.shape_cast %6 : vector<16xf32> to vector<16x1xf32>
    %cst_6 = arith.constant 3.200000e+01 : f32
    %8 = vector.broadcast %cst_6 : f32 to vector<16x1xf32>
    %9 = arith.divf %7, %8 : vector<16x1xf32>
    %10 = vector.broadcast %9 : vector<16x1xf32> to vector<16x32xf32>
    %11 = arith.subf %1, %10 : vector<16x32xf32>
    %12 = arith.mulf %11, %11 : vector<16x32xf32>
    %cst_7 = arith.constant dense<0.000000e+00> : vector<16xf32>
    %13 = vector.multi_reduction <add>, %12, %cst_7 [1] : vector<16x32xf32> to vector<16xf32>
    %14 = vector.shape_cast %13 : vector<16xf32> to vector<16x1xf32>
    %cst_8 = arith.constant 3.200000e+01 : f32
    %15 = vector.broadcast %cst_8 : f32 to vector<16x1xf32>
    %16 = arith.divf %14, %15 : vector<16x1xf32>
    %17 = vector.broadcast %9 : vector<16x1xf32> to vector<16x32xf32>
    %18 = arith.subf %1, %17 : vector<16x32xf32>
    %cst_9 = arith.constant 9.99999974E-6 : f32
    %19 = vector.broadcast %cst_9 : f32 to vector<16x1xf32>
    %20 = arith.addf %16, %19 : vector<16x1xf32>
    %21 = math.rsqrt %20 : vector<16x1xf32>
    %22 = vector.broadcast %21 : vector<16x1xf32> to vector<16x32xf32>
    %23 = arith.mulf %18, %22 : vector<16x32xf32>
    %24 = vector.shape_cast %3 : vector<32xf32> to vector<1x32xf32>
    %25 = vector.broadcast %24 : vector<1x32xf32> to vector<16x32xf32>
    %26 = arith.mulf %23, %25 : vector<16x32xf32>
    %27 = vector.shape_cast %5 : vector<32xf32> to vector<1x32xf32>
    %28 = vector.broadcast %27 : vector<1x32xf32> to vector<16x32xf32>
    %29 = arith.addf %26, %28 : vector<16x32xf32>
    %c0_10 = arith.constant 0 : index
    %c0_11 = arith.constant 0 : index
    %30 = vector.load %arg4[%c0_10, %c0_11] : memref<32x96xf32, #tpu.memory_space<vmem>>, vector<32x96xf32>
    %cst_12 = arith.constant dense<0.000000e+00> : vector<16x96xf32>
    %31 = tpu.matmul %29, %30, %cst_12 {dimension_numbers = #tpu.dot_dimension_numbers<[1], [0], [0], [1], [0, 0, 1, 1], [], []>} : vector<16x32xf32>, vector<32x96xf32>, vector<16x96xf32> -> vector<16x96xf32>
    %c0_13 = arith.constant 0 : index
    %c0_14 = arith.constant 0 : index
    %32 = vector.load %arg5[%c0_13, %c0_14] : memref<1x96xf32, #tpu.memory_space<vmem>>, vector<1x96xf32>
    %33 = vector.shape_cast %32 : vector<1x96xf32> to vector<96xf32>
    %34 = vector.shape_cast %33 : vector<96xf32> to vector<1x96xf32>
    %35 = vector.broadcast %34 : vector<1x96xf32> to vector<16x96xf32>
    %36 = arith.addf %31, %35 : vector<16x96xf32>
    %37 = vector.extract_strided_slice %36 {offsets = [0, 0], sizes = [16, 32], strides = [1, 1]} : vector<16x96xf32> to vector<16x32xf32>
    %38 = vector.shape_cast %37 : vector<16x32xf32> to vector<2x8x32xf32>
    %39 = vector.extract_strided_slice %36 {offsets = [0, 32], sizes = [16, 32], strides = [1, 1]} : vector<16x96xf32> to vector<16x32xf32>
    %40 = vector.shape_cast %39 : vector<16x32xf32> to vector<2x8x32xf32>
    %41 = vector.extract_strided_slice %36 {offsets = [0, 64], sizes = [16, 32], strides = [1, 1]} : vector<16x96xf32> to vector<16x32xf32>
    %42 = vector.shape_cast %41 : vector<16x32xf32> to vector<2x8x32xf32>
    %43 = tpu.iota {dimensions = array<i32: 2>} : vector<1x1x32xi32>
    %cst_15 = arith.constant 0.000000e+00 : f32
    %44 = vector.broadcast %cst_15 : f32 to vector<2x8x32xf32>
    %c0_i32 = arith.constant 0 : i32
    %45 = vector.broadcast %c0_i32 : i32 to vector<1x1x32xi32>
    %46 = arith.cmpi sge, %43, %45 : vector<1x1x32xi32>
    %c8_i32 = arith.constant 8 : i32
    %47 = vector.broadcast %c8_i32 : i32 to vector<1x1x32xi32>
    %48 = arith.cmpi slt, %43, %47 : vector<1x1x32xi32>
    %49 = arith.andi %46, %48 : vector<1x1x32xi1>
    %cst_16 = arith.constant 1.000000e+00 : f32
    %cst_17 = arith.constant 0.000000e+00 : f32
    %50 = vector.broadcast %cst_16 : f32 to vector<1x1x32xf32>
    %51 = vector.broadcast %cst_17 : f32 to vector<1x1x32xf32>
    %52 = arith.select %49, %50, %51 : vector<1x1x32xi1>, vector<1x1x32xf32>
    %53 = vector.broadcast %52 : vector<1x1x32xf32> to vector<2x8x32xf32>
    %54 = arith.mulf %38, %53 : vector<2x8x32xf32>
    "tpu.trace_start"() <{level = 10 : i32, message = "bqd,bkd->bqk"}> : () -> ()
    %cst_18 = arith.constant dense<0.000000e+00> : vector<2x8x8xf32>
    %55 = tpu.matmul %54, %40, %cst_18 {dimension_numbers = #tpu.dot_dimension_numbers<[2], [2], [1], [1], [0, 0, 0, 1, 1, 1], [0], [0]>} : vector<2x8x32xf32>, vector<2x8x32xf32>, vector<2x8x8xf32> -> vector<2x8x8xf32>
    "tpu.trace_stop"() : () -> ()
    %cst_19 = arith.constant 0.353553385 : f32
    %56 = vector.broadcast %cst_19 : f32 to vector<2x8x8xf32>
    %57 = arith.mulf %55, %56 : vector<2x8x8xf32>
    %cst_20 = arith.constant dense<0xFF800000> : vector<2x8xf32>
    %58 = vector.multi_reduction <maximumf>, %57, %cst_20 [2] : vector<2x8x8xf32> to vector<2x8xf32>
    %59 = vector.shape_cast %58 : vector<2x8xf32> to vector<2x8x1xf32>
    %60 = vector.broadcast %59 : vector<2x8x1xf32> to vector<2x8x8xf32>
    %61 = arith.subf %57, %60 : vector<2x8x8xf32>
    %62 = math.exp %61 : vector<2x8x8xf32>
    %cst_21 = arith.constant dense<0.000000e+00> : vector<2x8xf32>
    %63 = vector.multi_reduction <add>, %62, %cst_21 [2] : vector<2x8x8xf32> to vector<2x8xf32>
    %64 = vector.shape_cast %63 : vector<2x8xf32> to vector<2x8x1xf32>
    %65 = tpu.reciprocal %64 {approx = true} : vector<2x8x1xf32> -> vector<2x8x1xf32>
    %66 = vector.broadcast %65 : vector<2x8x1xf32> to vector<2x8x8xf32>
    %67 = arith.mulf %62, %66 : vector<2x8x8xf32>
    %68 = vector.broadcast %52 : vector<1x1x32xf32> to vector<2x8x32xf32>
    %69 = arith.mulf %42, %68 : vector<2x8x32xf32>
    "tpu.trace_start"() <{level = 10 : i32, message = "bqk,bkd->bqd"}> : () -> ()
    %cst_22 = arith.constant dense<0.000000e+00> : vector<2x8x32xf32>
    %70 = tpu.matmul %67, %69, %cst_22 {dimension_numbers = #tpu.dot_dimension_numbers<[2], [1], [1], [2], [0, 0, 0, 1, 1, 2], [0], [0]>} : vector<2x8x8xf32>, vector<2x8x32xf32>, vector<2x8x32xf32> -> vector<2x8x32xf32>
    "tpu.trace_stop"() : () -> ()
    %71 = arith.addf %44, %70 : vector<2x8x32xf32>
    %c8_i32_23 = arith.constant 8 : i32
    %72 = vector.broadcast %c8_i32_23 : i32 to vector<1x1x32xi32>
    %73 = arith.cmpi sge, %43, %72 : vector<1x1x32xi32>
    %c16_i32 = arith.constant 16 : i32
    %74 = vector.broadcast %c16_i32 : i32 to vector<1x1x32xi32>
    %75 = arith.cmpi slt, %43, %74 : vector<1x1x32xi32>
    %76 = arith.andi %73, %75 : vector<1x1x32xi1>
    %cst_24 = arith.constant 1.000000e+00 : f32
    %cst_25 = arith.constant 0.000000e+00 : f32
    %77 = vector.broadcast %cst_24 : f32 to vector<1x1x32xf32>
    %78 = vector.broadcast %cst_25 : f32 to vector<1x1x32xf32>
    %79 = arith.select %76, %77, %78 : vector<1x1x32xi1>, vector<1x1x32xf32>
    %80 = vector.broadcast %79 : vector<1x1x32xf32> to vector<2x8x32xf32>
    %81 = arith.mulf %38, %80 : vector<2x8x32xf32>
    "tpu.trace_start"() <{level = 10 : i32, message = "bqd,bkd->bqk"}> : () -> ()
    %cst_26 = arith.constant dense<0.000000e+00> : vector<2x8x8xf32>
    %82 = tpu.matmul %81, %40, %cst_26 {dimension_numbers = #tpu.dot_dimension_numbers<[2], [2], [1], [1], [0, 0, 0, 1, 1, 1], [0], [0]>} : vector<2x8x32xf32>, vector<2x8x32xf32>, vector<2x8x8xf32> -> vector<2x8x8xf32>
    "tpu.trace_stop"() : () -> ()
    %cst_27 = arith.constant 0.353553385 : f32
    %83 = vector.broadcast %cst_27 : f32 to vector<2x8x8xf32>
    %84 = arith.mulf %82, %83 : vector<2x8x8xf32>
    %cst_28 = arith.constant dense<0xFF800000> : vector<2x8xf32>
    %85 = vector.multi_reduction <maximumf>, %84, %cst_28 [2] : vector<2x8x8xf32> to vector<2x8xf32>
    %86 = vector.shape_cast %85 : vector<2x8xf32> to vector<2x8x1xf32>
    %87 = vector.broadcast %86 : vector<2x8x1xf32> to vector<2x8x8xf32>
    %88 = arith.subf %84, %87 : vector<2x8x8xf32>
    %89 = math.exp %88 : vector<2x8x8xf32>
    %cst_29 = arith.constant dense<0.000000e+00> : vector<2x8xf32>
    %90 = vector.multi_reduction <add>, %89, %cst_29 [2] : vector<2x8x8xf32> to vector<2x8xf32>
    %91 = vector.shape_cast %90 : vector<2x8xf32> to vector<2x8x1xf32>
    %92 = tpu.reciprocal %91 {approx = true} : vector<2x8x1xf32> -> vector<2x8x1xf32>
    %93 = vector.broadcast %92 : vector<2x8x1xf32> to vector<2x8x8xf32>
    %94 = arith.mulf %89, %93 : vector<2x8x8xf32>
    %95 = vector.broadcast %79 : vector<1x1x32xf32> to vector<2x8x32xf32>
    %96 = arith.mulf %42, %95 : vector<2x8x32xf32>
    "tpu.trace_start"() <{level = 10 : i32, message = "bqk,bkd->bqd"}> : () -> ()
    %cst_30 = arith.constant dense<0.000000e+00> : vector<2x8x32xf32>
    %97 = tpu.matmul %94, %96, %cst_30 {dimension_numbers = #tpu.dot_dimension_numbers<[2], [1], [1], [2], [0, 0, 0, 1, 1, 2], [0], [0]>} : vector<2x8x8xf32>, vector<2x8x32xf32>, vector<2x8x32xf32> -> vector<2x8x32xf32>
    "tpu.trace_stop"() : () -> ()
    %98 = arith.addf %71, %97 : vector<2x8x32xf32>
    %c16_i32_31 = arith.constant 16 : i32
    %99 = vector.broadcast %c16_i32_31 : i32 to vector<1x1x32xi32>
    %100 = arith.cmpi sge, %43, %99 : vector<1x1x32xi32>
    %c24_i32 = arith.constant 24 : i32
    %101 = vector.broadcast %c24_i32 : i32 to vector<1x1x32xi32>
    %102 = arith.cmpi slt, %43, %101 : vector<1x1x32xi32>
    %103 = arith.andi %100, %102 : vector<1x1x32xi1>
    %cst_32 = arith.constant 1.000000e+00 : f32
    %cst_33 = arith.constant 0.000000e+00 : f32
    %104 = vector.broadcast %cst_32 : f32 to vector<1x1x32xf32>
    %105 = vector.broadcast %cst_33 : f32 to vector<1x1x32xf32>
    %106 = arith.select %103, %104, %105 : vector<1x1x32xi1>, vector<1x1x32xf32>
    %107 = vector.broadcast %106 : vector<1x1x32xf32> to vector<2x8x32xf32>
    %108 = arith.mulf %38, %107 : vector<2x8x32xf32>
    "tpu.trace_start"() <{level = 10 : i32, message = "bqd,bkd->bqk"}> : () -> ()
    %cst_34 = arith.constant dense<0.000000e+00> : vector<2x8x8xf32>
    %109 = tpu.matmul %108, %40, %cst_34 {dimension_numbers = #tpu.dot_dimension_numbers<[2], [2], [1], [1], [0, 0, 0, 1, 1, 1], [0], [0]>} : vector<2x8x32xf32>, vector<2x8x32xf32>, vector<2x8x8xf32> -> vector<2x8x8xf32>
    "tpu.trace_stop"() : () -> ()
    %cst_35 = arith.constant 0.353553385 : f32
    %110 = vector.broadcast %cst_35 : f32 to vector<2x8x8xf32>
    %111 = arith.mulf %109, %110 : vector<2x8x8xf32>
    %cst_36 = arith.constant dense<0xFF800000> : vector<2x8xf32>
    %112 = vector.multi_reduction <maximumf>, %111, %cst_36 [2] : vector<2x8x8xf32> to vector<2x8xf32>
    %113 = vector.shape_cast %112 : vector<2x8xf32> to vector<2x8x1xf32>
    %114 = vector.broadcast %113 : vector<2x8x1xf32> to vector<2x8x8xf32>
    %115 = arith.subf %111, %114 : vector<2x8x8xf32>
    %116 = math.exp %115 : vector<2x8x8xf32>
    %cst_37 = arith.constant dense<0.000000e+00> : vector<2x8xf32>
    %117 = vector.multi_reduction <add>, %116, %cst_37 [2] : vector<2x8x8xf32> to vector<2x8xf32>
    %118 = vector.shape_cast %117 : vector<2x8xf32> to vector<2x8x1xf32>
    %119 = tpu.reciprocal %118 {approx = true} : vector<2x8x1xf32> -> vector<2x8x1xf32>
    %120 = vector.broadcast %119 : vector<2x8x1xf32> to vector<2x8x8xf32>
    %121 = arith.mulf %116, %120 : vector<2x8x8xf32>
    %122 = vector.broadcast %106 : vector<1x1x32xf32> to vector<2x8x32xf32>
    %123 = arith.mulf %42, %122 : vector<2x8x32xf32>
    "tpu.trace_start"() <{level = 10 : i32, message = "bqk,bkd->bqd"}> : () -> ()
    %cst_38 = arith.constant dense<0.000000e+00> : vector<2x8x32xf32>
    %124 = tpu.matmul %121, %123, %cst_38 {dimension_numbers = #tpu.dot_dimension_numbers<[2], [1], [1], [2], [0, 0, 0, 1, 1, 2], [0], [0]>} : vector<2x8x8xf32>, vector<2x8x32xf32>, vector<2x8x32xf32> -> vector<2x8x32xf32>
    "tpu.trace_stop"() : () -> ()
    %125 = arith.addf %98, %124 : vector<2x8x32xf32>
    %c24_i32_39 = arith.constant 24 : i32
    %126 = vector.broadcast %c24_i32_39 : i32 to vector<1x1x32xi32>
    %127 = arith.cmpi sge, %43, %126 : vector<1x1x32xi32>
    %c32_i32 = arith.constant 32 : i32
    %128 = vector.broadcast %c32_i32 : i32 to vector<1x1x32xi32>
    %129 = arith.cmpi slt, %43, %128 : vector<1x1x32xi32>
    %130 = arith.andi %127, %129 : vector<1x1x32xi1>
    %cst_40 = arith.constant 1.000000e+00 : f32
    %cst_41 = arith.constant 0.000000e+00 : f32
    %131 = vector.broadcast %cst_40 : f32 to vector<1x1x32xf32>
    %132 = vector.broadcast %cst_41 : f32 to vector<1x1x32xf32>
    %133 = arith.select %130, %131, %132 : vector<1x1x32xi1>, vector<1x1x32xf32>
    %134 = vector.broadcast %133 : vector<1x1x32xf32> to vector<2x8x32xf32>
    %135 = arith.mulf %38, %134 : vector<2x8x32xf32>
    "tpu.trace_start"() <{level = 10 : i32, message = "bqd,bkd->bqk"}> : () -> ()
    %cst_42 = arith.constant dense<0.000000e+00> : vector<2x8x8xf32>
    %136 = tpu.matmul %135, %40, %cst_42 {dimension_numbers = #tpu.dot_dimension_numbers<[2], [2], [1], [1], [0, 0, 0, 1, 1, 1], [0], [0]>} : vector<2x8x32xf32>, vector<2x8x32xf32>, vector<2x8x8xf32> -> vector<2x8x8xf32>
    "tpu.trace_stop"() : () -> ()
    %cst_43 = arith.constant 0.353553385 : f32
    %137 = vector.broadcast %cst_43 : f32 to vector<2x8x8xf32>
    %138 = arith.mulf %136, %137 : vector<2x8x8xf32>
    %cst_44 = arith.constant dense<0xFF800000> : vector<2x8xf32>
    %139 = vector.multi_reduction <maximumf>, %138, %cst_44 [2] : vector<2x8x8xf32> to vector<2x8xf32>
    %140 = vector.shape_cast %139 : vector<2x8xf32> to vector<2x8x1xf32>
    %141 = vector.broadcast %140 : vector<2x8x1xf32> to vector<2x8x8xf32>
    %142 = arith.subf %138, %141 : vector<2x8x8xf32>
    %143 = math.exp %142 : vector<2x8x8xf32>
    %cst_45 = arith.constant dense<0.000000e+00> : vector<2x8xf32>
    %144 = vector.multi_reduction <add>, %143, %cst_45 [2] : vector<2x8x8xf32> to vector<2x8xf32>
    %145 = vector.shape_cast %144 : vector<2x8xf32> to vector<2x8x1xf32>
    %146 = tpu.reciprocal %145 {approx = true} : vector<2x8x1xf32> -> vector<2x8x1xf32>
    %147 = vector.broadcast %146 : vector<2x8x1xf32> to vector<2x8x8xf32>
    %148 = arith.mulf %143, %147 : vector<2x8x8xf32>
    %149 = vector.broadcast %133 : vector<1x1x32xf32> to vector<2x8x32xf32>
    %150 = arith.mulf %42, %149 : vector<2x8x32xf32>
    "tpu.trace_start"() <{level = 10 : i32, message = "bqk,bkd->bqd"}> : () -> ()
    %cst_46 = arith.constant dense<0.000000e+00> : vector<2x8x32xf32>
    %151 = tpu.matmul %148, %150, %cst_46 {dimension_numbers = #tpu.dot_dimension_numbers<[2], [1], [1], [2], [0, 0, 0, 1, 1, 2], [0], [0]>} : vector<2x8x8xf32>, vector<2x8x32xf32>, vector<2x8x32xf32> -> vector<2x8x32xf32>
    "tpu.trace_stop"() : () -> ()
    %152 = arith.addf %125, %151 : vector<2x8x32xf32>
    %153 = vector.shape_cast %152 : vector<2x8x32xf32> to vector<16x32xf32>
    %c0_47 = arith.constant 0 : index
    %c0_48 = arith.constant 0 : index
    %154 = vector.load %arg6[%c0_47, %c0_48] : memref<32x32xf32, #tpu.memory_space<vmem>>, vector<32x32xf32>
    %cst_49 = arith.constant dense<0.000000e+00> : vector<16x32xf32>
    %155 = tpu.matmul %153, %154, %cst_49 {dimension_numbers = #tpu.dot_dimension_numbers<[1], [0], [0], [1], [0, 0, 1, 1], [], []>} : vector<16x32xf32>, vector<32x32xf32>, vector<16x32xf32> -> vector<16x32xf32>
    %c0_50 = arith.constant 0 : index
    %c0_51 = arith.constant 0 : index
    %156 = vector.load %arg7[%c0_50, %c0_51] : memref<1x32xf32, #tpu.memory_space<vmem>>, vector<1x32xf32>
    %157 = vector.shape_cast %156 : vector<1x32xf32> to vector<32xf32>
    %158 = vector.shape_cast %157 : vector<32xf32> to vector<1x32xf32>
    %159 = vector.broadcast %158 : vector<1x32xf32> to vector<16x32xf32>
    %160 = arith.addf %155, %159 : vector<16x32xf32>
    %161 = arith.addf %1, %160 : vector<16x32xf32>
    %c0_52 = arith.constant 0 : index
    %c0_53 = arith.constant 0 : index
    %162 = vector.load %arg8[%c0_52, %c0_53] : memref<1x32xf32, #tpu.memory_space<vmem>>, vector<1x32xf32>
    %163 = vector.shape_cast %162 : vector<1x32xf32> to vector<32xf32>
    %c0_54 = arith.constant 0 : index
    %c0_55 = arith.constant 0 : index
    %164 = vector.load %arg9[%c0_54, %c0_55] : memref<1x32xf32, #tpu.memory_space<vmem>>, vector<1x32xf32>
    %165 = vector.shape_cast %164 : vector<1x32xf32> to vector<32xf32>
    %cst_56 = arith.constant dense<0.000000e+00> : vector<16xf32>
    %166 = vector.multi_reduction <add>, %161, %cst_56 [1] : vector<16x32xf32> to vector<16xf32>
    %167 = vector.shape_cast %166 : vector<16xf32> to vector<16x1xf32>
    %cst_57 = arith.constant 3.200000e+01 : f32
    %168 = vector.broadcast %cst_57 : f32 to vector<16x1xf32>
    %169 = arith.divf %167, %168 : vector<16x1xf32>
    %170 = vector.broadcast %169 : vector<16x1xf32> to vector<16x32xf32>
    %171 = arith.subf %161, %170 : vector<16x32xf32>
    %172 = arith.mulf %171, %171 : vector<16x32xf32>
    %cst_58 = arith.constant dense<0.000000e+00> : vector<16xf32>
    %173 = vector.multi_reduction <add>, %172, %cst_58 [1] : vector<16x32xf32> to vector<16xf32>
    %174 = vector.shape_cast %173 : vector<16xf32> to vector<16x1xf32>
    %cst_59 = arith.constant 3.200000e+01 : f32
    %175 = vector.broadcast %cst_59 : f32 to vector<16x1xf32>
    %176 = arith.divf %174, %175 : vector<16x1xf32>
    %177 = vector.broadcast %169 : vector<16x1xf32> to vector<16x32xf32>
    %178 = arith.subf %161, %177 : vector<16x32xf32>
    %cst_60 = arith.constant 9.99999974E-6 : f32
    %179 = vector.broadcast %cst_60 : f32 to vector<16x1xf32>
    %180 = arith.addf %176, %179 : vector<16x1xf32>
    %181 = math.rsqrt %180 : vector<16x1xf32>
    %182 = vector.broadcast %181 : vector<16x1xf32> to vector<16x32xf32>
    %183 = arith.mulf %178, %182 : vector<16x32xf32>
    %184 = vector.shape_cast %163 : vector<32xf32> to vector<1x32xf32>
    %185 = vector.broadcast %184 : vector<1x32xf32> to vector<16x32xf32>
    %186 = arith.mulf %183, %185 : vector<16x32xf32>
    %187 = vector.shape_cast %165 : vector<32xf32> to vector<1x32xf32>
    %188 = vector.broadcast %187 : vector<1x32xf32> to vector<16x32xf32>
    %189 = arith.addf %186, %188 : vector<16x32xf32>
    %c0_61 = arith.constant 0 : index
    %c0_62 = arith.constant 0 : index
    %190 = vector.load %arg10[%c0_61, %c0_62] : memref<32x64xf32, #tpu.memory_space<vmem>>, vector<32x64xf32>
    %cst_63 = arith.constant dense<0.000000e+00> : vector<16x64xf32>
    %191 = tpu.matmul %189, %190, %cst_63 {dimension_numbers = #tpu.dot_dimension_numbers<[1], [0], [0], [1], [0, 0, 1, 1], [], []>} : vector<16x32xf32>, vector<32x64xf32>, vector<16x64xf32> -> vector<16x64xf32>
    %c0_64 = arith.constant 0 : index
    %c0_65 = arith.constant 0 : index
    %192 = vector.load %arg11[%c0_64, %c0_65] : memref<1x64xf32, #tpu.memory_space<vmem>>, vector<1x64xf32>
    %193 = vector.shape_cast %192 : vector<1x64xf32> to vector<64xf32>
    %194 = vector.shape_cast %193 : vector<64xf32> to vector<1x64xf32>
    %195 = vector.broadcast %194 : vector<1x64xf32> to vector<16x64xf32>
    %196 = arith.addf %191, %195 : vector<16x64xf32>
    %cst_66 = arith.constant 0.000000e+00 : f32
    %197 = vector.broadcast %cst_66 : f32 to vector<16x64xf32>
    %198 = arith.maximumf %196, %197 : vector<16x64xf32>
    %c0_67 = arith.constant 0 : index
    %c0_68 = arith.constant 0 : index
    %199 = vector.load %arg12[%c0_67, %c0_68] : memref<64x32xf32, #tpu.memory_space<vmem>>, vector<64x32xf32>
    %cst_69 = arith.constant dense<0.000000e+00> : vector<16x32xf32>
    %200 = tpu.matmul %198, %199, %cst_69 {dimension_numbers = #tpu.dot_dimension_numbers<[1], [0], [0], [1], [0, 0, 1, 1], [], []>} : vector<16x64xf32>, vector<64x32xf32>, vector<16x32xf32> -> vector<16x32xf32>
    %c0_70 = arith.constant 0 : index
    %c0_71 = arith.constant 0 : index
    %201 = vector.load %arg13[%c0_70, %c0_71] : memref<1x32xf32, #tpu.memory_space<vmem>>, vector<1x32xf32>
    %202 = vector.shape_cast %201 : vector<1x32xf32> to vector<32xf32>
    %203 = vector.shape_cast %202 : vector<32xf32> to vector<1x32xf32>
    %204 = vector.broadcast %203 : vector<1x32xf32> to vector<16x32xf32>
    %205 = arith.addf %200, %204 : vector<16x32xf32>
    %206 = arith.addf %161, %205 : vector<16x32xf32>
    %207 = vector.shape_cast %206 : vector<16x32xf32> to vector<2x8x32xf32>
    %c0_72 = arith.constant 0 : index
    %c0_73 = arith.constant 0 : index
    %c0_74 = arith.constant 0 : index
    %208 = vector.load %arg14[%c0_72, %c0_73, %c0_74] : memref<2x8x32xf32, #tpu.memory_space<vmem>>, vector<2x8x32xf32>
    tpu.vector_store %arg14[%c0_72, %c0_73, %c0_74], %207 {strides = array<i32>} : memref<2x8x32xf32, #tpu.memory_space<vmem>>, vector<2x8x32xf32>,
    return
  }
  func.func @transform_0(%arg0: i32) -> (i32, i32, i32) {
    %c0_i32 = arith.constant 0 : i32
    %c0_i32_0 = arith.constant 0 : i32
    %c0_i32_1 = arith.constant 0 : i32
    return %arg0, %c0_i32, %c0_i32_0 : i32, i32, i32
  }
  func.func @transform_1(%arg0: i32) -> (i32, i32) {
    %c0_i32 = arith.constant 0 : i32
    %c0_i32_0 = arith.constant 0 : i32
    %c0_i32_1 = arith.constant 0 : i32
    return %c0_i32, %c0_i32_0 : i32, i32
  }
  func.func @transform_2(%arg0: i32) -> (i32, i32) {
    %c0_i32 = arith.constant 0 : i32
    %c0_i32_0 = arith.constant 0 : i32
    %c0_i32_1 = arith.constant 0 : i32
    return %c0_i32, %c0_i32_0 : i32, i32
  }
  func.func @transform_3(%arg0: i32) -> (i32, i32) {
    %c0_i32 = arith.constant 0 : i32
    %c0_i32_0 = arith.constant 0 : i32
    %c0_i32_1 = arith.constant 0 : i32
    return %c0_i32, %c0_i32_0 : i32, i32
  }
  func.func @transform_4(%arg0: i32) -> (i32, i32) {
    %c0_i32 = arith.constant 0 : i32
    %c0_i32_0 = arith.constant 0 : i32
    %c0_i32_1 = arith.constant 0 : i32
    return %c0_i32, %c0_i32_0 : i32, i32
  }
  func.func @transform_5(%arg0: i32) -> (i32, i32) {
    %c0_i32 = arith.constant 0 : i32
    %c0_i32_0 = arith.constant 0 : i32
    %c0_i32_1 = arith.constant 0 : i32
    return %c0_i32, %c0_i32_0 : i32, i32
  }
  func.func @transform_6(%arg0: i32) -> (i32, i32) {
    %c0_i32 = arith.constant 0 : i32
    %c0_i32_0 = arith.constant 0 : i32
    %c0_i32_1 = arith.constant 0 : i32
    return %c0_i32, %c0_i32_0 : i32, i32
  }
  func.func @transform_7(%arg0: i32) -> (i32, i32) {
    %c0_i32 = arith.constant 0 : i32
    %c0_i32_0 = arith.constant 0 : i32
    %c0_i32_1 = arith.constant 0 : i32
    return %c0_i32, %c0_i32_0 : i32, i32
  }
  func.func @transform_8(%arg0: i32) -> (i32, i32) {
    %c0_i32 = arith.constant 0 : i32
    %c0_i32_0 = arith.constant 0 : i32
    %c0_i32_1 = arith.constant 0 : i32
    return %c0_i32, %c0_i32_0 : i32, i32
  }
  func.func @transform_9(%arg0: i32) -> (i32, i32) {
    %c0_i32 = arith.constant 0 : i32
    %c0_i32_0 = arith.constant 0 : i32
    %c0_i32_1 = arith.constant 0 : i32
    return %c0_i32, %c0_i32_0 : i32, i32
  }
  func.func @transform_10(%arg0: i32) -> (i32, i32) {
    %c0_i32 = arith.constant 0 : i32
    %c0_i32_0 = arith.constant 0 : i32
    %c0_i32_1 = arith.constant 0 : i32
    return %c0_i32, %c0_i32_0 : i32, i32
  }
  func.func @transform_11(%arg0: i32) -> (i32, i32) {
    %c0_i32 = arith.constant 0 : i32
    %c0_i32_0 = arith.constant 0 : i32
    %c0_i32_1 = arith.constant 0 : i32
    return %c0_i32, %c0_i32_0 : i32, i32
  }
  func.func @transform_12(%arg0: i32) -> (i32, i32) {
    %c0_i32 = arith.constant 0 : i32
    %c0_i32_0 = arith.constant 0 : i32
    %c0_i32_1 = arith.constant 0 : i32
    return %c0_i32, %c0_i32_0 : i32, i32
  }
  func.func @transform_13(%arg0: i32) -> (i32, i32, i32) {
    %c0_i32 = arith.constant 0 : i32
    %c0_i32_0 = arith.constant 0 : i32
    %c0_i32_1 = arith.constant 0 : i32
    return %arg0, %c0_i32, %c0_i32_0 : i32, i32, i32
  }
}

</mosaic_0001>

<llo_original>
// kernel: tpu_custom_call.1
$region0: #{tpu_custom_call.1}
  #allocation0 [shape = 'u32[]', space=smem, size = 0x4, offset = 0x4, fixed_abs, tag = 'smem constant byte address 0x4 - core index']
  #allocation1 [shape = 'u32[144,128]{1,0:T(1,128)}', space=vmem, size = 0x12000, scoped, tag = 'internal scratch']
  %s0 = inlined_call_operand.hbm [shape: f32[2,8,32], index: 0, kind: input, shape index: {}]
  %s1 = inlined_call_operand.vmem [shape: f32[1,32], index: 1, kind: input, shape index: {}]
  %s2 = inlined_call_operand.vmem [shape: f32[1,32], index: 2, kind: input, shape index: {}]
  %s3 = inlined_call_operand.vmem [shape: f32[32,96], index: 3, kind: input, shape index: {}]
  %s4 = inlined_call_operand.vmem [shape: f32[1,96], index: 4, kind: input, shape index: {}]
  %s5 = inlined_call_operand.vmem [shape: f32[32,32], index: 5, kind: input, shape index: {}]
  %s6 = inlined_call_operand.vmem [shape: f32[1,32], index: 6, kind: input, shape index: {}]
  %s7 = inlined_call_operand.vmem [shape: f32[1,32], index: 7, kind: input, shape index: {}]
  %s8 = inlined_call_operand.vmem [shape: f32[1,32], index: 8, kind: input, shape index: {}]
  %s9 = inlined_call_operand.vmem [shape: f32[32,64], index: 9, kind: input, shape index: {}]
  %s10 = inlined_call_operand.vmem [shape: f32[1,64], index: 10, kind: input, shape index: {}]
  %s11 = inlined_call_operand.vmem [shape: f32[64,32], index: 11, kind: input, shape index: {}]
  %s12 = inlined_call_operand.vmem [shape: f32[1,32], index: 12, kind: input, shape index: {}]
  %s13 = inlined_call_operand.hbm [shape: f32[2,8,32], index: 13, kind: output, shape index: {}]
  %s14 = sld [smem:[#allocation0]]
  $region66: #{tpu_custom_call.1} parent=0
    _
  %s16 = ssub.s32 1, %s14
  %s17 = scalar_select 0, %s16, %s14
  $region1: #{tpu_custom_call.1} parent=0
    #allocation2 [shape = 'u8[8192]{0}', space=vmem, size = 0x2000, scoped, tag = 'input window, operand 0, single buffered']
    #allocation3 [shape = 's32[1]{0}', space=sflag, size = 0x4, scoped, tag = 'scoped memory for tpu_custom_call.1']
    #allocation4 [shape = 's32[1]{0}', space=sflag, size = 0x4, scoped, tag = 'scoped memory for tpu_custom_call.1']
    #allocation5 [shape = 'u8[8192]{0}', space=vmem, size = 0x2000, scoped, tag = 'output window, operand 0, single buffered']
    %18 = vsyncpa [#allocation3], 0
    %19 = vsyncpa [#allocation4], 0
    // Predicated region
    $region2: #{tpu_custom_call.1} parent=1 // pred_check
      _
    $region3: #{tpu_custom_call.1} parent=1 // pred_check_branch
      %21 = sbr.rel (0) target = $region5
    $region4: #{tpu_custom_call.1} parent=1 // pred_region
      %s23 = ssub.s32 256, 256
      %24 = vsyncadd [#allocation3], %s23
      %s25 = sshll.u32 [#allocation2], 4
      %s26 = int_to_ptr.vmem [resolvable:$true] %s25
      %31 = dma.hbm_to_vmem [thread:$0]  %s0, 256, %s26, [#allocation3], 128, 128, 8
    $region5: #{tpu_custom_call.1} parent=1 // pred_fallthru
      _
    // Predicated region
    $region6: #{tpu_custom_call.1} parent=1 // pred_check
      _
    $region7: #{tpu_custom_call.1} parent=1 // pred_check_branch
      %33 = sbr.rel (0) target = $region9
    $region8: #{tpu_custom_call.1} parent=1 // pred_region
      _
    $region9: #{tpu_custom_call.1} parent=1 // pred_fallthru
      _
    // Predicated region
    $region10: #{tpu_custom_call.1} parent=1 // pred_check
      _
    $region11: #{tpu_custom_call.1} parent=1 // pred_check_branch
      %35 = sbr.rel (0) target = $region13
    $region12: #{tpu_custom_call.1} parent=1 // pred_region
      _
    $region13: #{tpu_custom_call.1} parent=1 // pred_fallthru
      _
    // Predicated region
    $region14: #{tpu_custom_call.1} parent=1 // pred_check
      _
    $region15: #{tpu_custom_call.1} parent=1 // pred_check_branch
      %37 = sbr.rel (0) target = $region17
    $region16: #{tpu_custom_call.1} parent=1 // pred_region
      _
    $region17: #{tpu_custom_call.1} parent=1 // pred_fallthru
      _
    // Predicated region
    $region18: #{tpu_custom_call.1} parent=1 // pred_check
      _
    $region19: #{tpu_custom_call.1} parent=1 // pred_check_branch
      %39 = sbr.rel (0) target = $region21
    $region20: #{tpu_custom_call.1} parent=1 // pred_region
      _
    $region21: #{tpu_custom_call.1} parent=1 // pred_fallthru
      _
    // Predicated region
    $region22: #{tpu_custom_call.1} parent=1 // pred_check
      _
    $region23: #{tpu_custom_call.1} parent=1 // pred_check_branch
      %41 = sbr.rel (0) target = $region25
    $region24: #{tpu_custom_call.1} parent=1 // pred_region
      _
    $region25: #{tpu_custom_call.1} parent=1 // pred_fallthru
      _
    // Predicated region
    $region26: #{tpu_custom_call.1} parent=1 // pred_check
      _
    $region27: #{tpu_custom_call.1} parent=1 // pred_check_branch
      %43 = sbr.rel (0) target = $region29
    $region28: #{tpu_custom_call.1} parent=1 // pred_region
      _
    $region29: #{tpu_custom_call.1} parent=1 // pred_fallthru
      _
    // Predicated region
    $region30: #{tpu_custom_call.1} parent=1 // pred_check
      _
    $region31: #{tpu_custom_call.1} parent=1 // pred_check_branch
      %45 = sbr.rel (0) target = $region33
    $region32: #{tpu_custom_call.1} parent=1 // pred_region
      _
    $region33: #{tpu_custom_call.1} parent=1 // pred_fallthru
      _
    // Predicated region
    $region34: #{tpu_custom_call.1} parent=1 // pred_check
      _
    $region35: #{tpu_custom_call.1} parent=1 // pred_check_branch
      %47 = sbr.rel (0) target = $region37
    $region36: #{tpu_custom_call.1} parent=1 // pred_region
      _
    $region37: #{tpu_custom_call.1} parent=1 // pred_fallthru
      _
    // Predicated region
    $region38: #{tpu_custom_call.1} parent=1 // pred_check
      _
    $region39: #{tpu_custom_call.1} parent=1 // pred_check_branch
      %49 = sbr.rel (0) target = $region41
    $region40: #{tpu_custom_call.1} parent=1 // pred_region
      _
    $region41: #{tpu_custom_call.1} parent=1 // pred_fallthru
      _
    // Predicated region
    $region42: #{tpu_custom_call.1} parent=1 // pred_check
      _
    $region43: #{tpu_custom_call.1} parent=1 // pred_check_branch
      %51 = sbr.rel (0) target = $region45
    $region44: #{tpu_custom_call.1} parent=1 // pred_region
      _
    $region45: #{tpu_custom_call.1} parent=1 // pred_fallthru
      _
    // Predicated region
    $region46: #{tpu_custom_call.1} parent=1 // pred_check
      _
    $region47: #{tpu_custom_call.1} parent=1 // pred_check_branch
      %53 = sbr.rel (0) target = $region49
    $region48: #{tpu_custom_call.1} parent=1 // pred_region
      _
    $region49: #{tpu_custom_call.1} parent=1 // pred_fallthru
      _
    // Predicated region
    $region50: #{tpu_custom_call.1} parent=1 // pred_check
      _
    $region51: #{tpu_custom_call.1} parent=1 // pred_check_branch
      %55 = sbr.rel (0) target = $region53
    $region52: #{tpu_custom_call.1} parent=1 // pred_region
      _
    $region53: #{tpu_custom_call.1} parent=1 // pred_fallthru
      _
    // Predicated region
    $region54: #{tpu_custom_call.1} parent=1 // pred_check
      _
    $region55: #{tpu_custom_call.1} parent=1 // pred_check_branch
      %57 = sbr.rel (0) target = $region57
    $region56: #{tpu_custom_call.1} parent=1 // pred_region
      %58 = dma.done [#allocation3], 256
    $region57: #{tpu_custom_call.1} parent=1 // pred_fallthru
      _
    %v59 = vld [vmem:[#allocation2] sm:$0xff]
    %v60 = vld [vmem:[#allocation2 + $0x8] sm:$0xff]
    %v61 = vld [vmem:[%s1] sm:$0x1]
    %v62 = vld [vmem:[%s2] sm:$0x1]
    %vm63 = vcmask 261120
    %v64 = vsel %vm63, %v59, 0.0
    %65 = vadd.xlane.f32.xlu0 %v64
    %v66 = vpop.xlane.xlu0 %65
    %v67 = vsel %vm63, %v60, 0.0
    %68 = vadd.xlane.f32.xlu0 %v67
    %v69 = vpop.xlane.xlu0 %68
    %v70 = vrcp.pop 32.0
    %v71 = vmul.f32 %v66, %v70
    %v72 = vmul.f32 %v69, %v70
    %v73 = vsub.f32 %v59, %v71
    %v74 = vsub.f32 %v60, %v72
    %v75 = vmul.f32 %v73, %v73
    %v76 = vmul.f32 %v74, %v74
    %v77 = vsel %vm63, %v75, 0.0
    %78 = vadd.xlane.f32.xlu0 %v77
    %v79 = vpop.xlane.xlu0 %78
    %v80 = vsel %vm63, %v76, 0.0
    %81 = vadd.xlane.f32.xlu0 %v80
    %v82 = vpop.xlane.xlu0 %81
    %v83 = vmul.f32 %v79, %v70
    %v84 = vmul.f32 %v82, %v70
    %v85 = vadd.f32 %v83, 1e-05
    %v86 = vadd.f32 %v84, 1e-05
    %v87 = vrsqrt.pop %v85
    %v88 = vrsqrt.pop %v86
    %v89 = vmul.f32 %v73, %v87
    %v90 = vmul.f32 %v74, %v88
    %v92 = vlaneseq
    %v93 = vshrl.u32 %v92, 7
    %v94 = vsub.s32 0, %v93
    %v95 = vrot.slane %v61, %v94
    %v97 = vmul.f32 %v89, %v95
    %v98 = vmul.f32 %v90, %v95
    %v100 = vlaneseq
    %v101 = vshrl.u32 %v100, 7
    %v102 = vsub.s32 0, %v101
    %v103 = vrot.slane %v62, %v102
    %v105 = vadd.f32 %v97, %v103
    %v106 = vadd.f32 %v98, %v103
    %v107 = vld [vmem:[%s3] sm:$0xff]
    %v108 = vld [vmem:[%s3 + $0x8] sm:$0xff]
    %v109 = vld [vmem:[%s3 + $0x10] sm:$0xff]
    %v110 = vld [vmem:[%s3 + $0x18] sm:$0xff]
    %v111 = vld [vmem:[%s4] sm:$0x1]
    %v113 = vlaneseq
    %v114 = vshrl.u32 %v113, 7
    %v115 = vsub.s32 0, %v114
    %v116 = vrot.slane %v111, %v115
    %v119 = vsel %vm63, %v105, 0
    %v122 = vsel %vm63, %v106, 0
    %124 = vmatprep.subr.mxu0 0.0
    %125 = vmatpush1.msra.mxu0 %v107
    %126 = vmatprep.subr.mxu0 0.0
    %127 = vmatpush1.msra.mxu0 %v108
    %128 = vmatprep.subr.mxu0 0.0
    %129 = vmatpush1.msra.mxu0 %v109
    %130 = vmatprep.subr.mxu0 0.0
    %131 = vmatpush1.msra.mxu0 %v110
    %132 = vmatprep.subr.mxu0 0.0
    %133 = vmatpush1.msra.mxu0 0.0
    %134 = vmatprep.subr.mxu0 0.0
    %135 = vmatpush1.msra.mxu0 0.0
    %136 = vmatprep.subr.mxu0 0.0
    %137 = vmatpush1.msra.mxu0 0.0
    %138 = vmatprep.subr.mxu0 0.0
    %139 = vmatpush1.msra.mxu0 0.0
    %140 = vmatprep.subr.mxu0 0.0
    %141 = vmatpush1.msra.mxu0 0.0
    %142 = vmatprep.subr.mxu0 0.0
    %143 = vmatpush1.msra.mxu0 0.0
    %144 = vmatprep.subr.mxu0 0.0
    %145 = vmatpush1.msra.mxu0 0.0
    %146 = vmatprep.subr.mxu0 0.0
    %147 = vmatpush1.msra.mxu0 0.0
    %148 = vmatprep.subr.mxu0 0.0
    %149 = vmatpush1.msra.mxu0 0.0
    %150 = vmatprep.subr.mxu0 0.0
    %151 = vmatpush1.msra.mxu0 0.0
    %152 = vmatprep.subr.mxu0 0.0
    %153 = vmatpush1.msra.mxu0 0.0
    %154 = vmatprep.subr.mxu0 0.0
    %155 = vmatpush1.msra.mxu0 0.0
    %156 = vmatprep.subr.mxu0 0.0
    %157 = vmatpush1.msra.mxu0 0.0
    %158 = vmatprep.subr.mxu0 0.0
    %159 = vmatpush1.msra.mxu0 0.0
    %160 = vmatprep.subr.mxu0 0.0
    %161 = vmatpush1.msra.mxu0 0.0
    %162 = vmatprep.subr.mxu0 0.0
    %163 = vmatpush1.msra.mxu0 0.0
    %164 = vmatprep.subr.mxu0 0.0
    %165 = vmatpush1.msra.mxu0 0.0
    %166 = vmatprep.subr.mxu0 0.0
    %167 = vmatpush1.msra.mxu0 0.0
    %168 = vmatprep.subr.mxu0 0.0
    %169 = vmatpush1.msra.mxu0 0.0
    %170 = vmatprep.subr.mxu0 0.0
    %171 = vmatpush1.msra.mxu0 0.0
    %172 = vmatprep.subr.mxu0 0.0
    %173 = vmatpush1.msra.mxu0 0.0
    %174 = vmatprep.subr.mxu0 0.0
    %175 = vmatpush1.msra.mxu0 0.0
    %176 = vmatprep.subr.mxu0 0.0
    %177 = vmatpush1.msra.mxu0 0.0
    %178 = vmatprep.subr.mxu0 0.0
    %179 = vmatpush1.msra.mxu0 0.0
    %180 = vmatprep.subr.mxu0 0.0
    %181 = vmatpush1.msra.mxu0 0.0
    %182 = vmatprep.subr.mxu0 0.0
    %183 = vmatpush1.msra.mxu0 0.0
    %184 = vmatprep.subr.mxu0 0.0
    %185 = vmatpush1.msra.mxu0 0.0
    %186 = vmatprep.subr.mxu0 0.0
    %187 = vmatpush1.msra.mxu0 0.0
    %188 = vmatprep.mubr.f32.mxu0 0.0
    %189 = vmatmul.mubr.f32.gmra.mrb[0].mxu0 %v119
    %v190 = vpop.f32.mrb[0].mxu0
    %v191 = vadd.f32 %v116, %v190
    %v192 = vpop.f32.mrb[0].mxu0
    %193 = vmatprep.mubr.f32.mxu0 0.0
    %194 = vmatmul.mubr.f32.gmra.mrb[0].mxu0 %v122
    %v195 = vpop.f32.mrb[0].mxu0
    %v196 = vadd.f32 %v116, %v195
    %v197 = vpop.f32.mrb[0].mxu0
    %198 = vdwg.mxu0
    %v199 = vlaneseq
    %v200 = vand.u32 %v199, 127
    %vm201 = vcmp.ge.s32.totalorder %v200, 0
    %vm202 = vcmp.lt.s32.totalorder %v200, 8
    %vm203 = vmand %vm201, %vm202
    %v204 = vsel %vm203, 1.0, 0.0
    %v205 = vmul.f32 %v191, %v204
    %v206 = vmul.f32 %v196, %v204
    %208 = vrot.lane.b32.xlu0 %v191, 96
    %v209 = vpop.permute.xlu0 %208
    %v211 = vsel %vm63, %v205, 0
    %v213 = vsel %vm63, %v209, 0
    %215 = vmatprep.subr.mxu0 0.0
    %216 = vmatpush1.xpose.msra.mxu0 %v213
    %217 = vmatprep.subr.mxu0 0.0
    %218 = vmatpush1.xpose.msra.mxu0 0.0
    %219 = vmatprep.subr.mxu0 0.0
    %220 = vmatpush1.xpose.msra.mxu0 0.0
    %221 = vmatprep.subr.mxu0 0.0
    %222 = vmatpush1.xpose.msra.mxu0 0.0
    %223 = vmatprep.subr.mxu0 0.0
    %224 = vmatpush1.xpose.msra.mxu0 0.0
    %225 = vmatprep.subr.mxu0 0.0
    %226 = vmatpush1.xpose.msra.mxu0 0.0
    %227 = vmatprep.subr.mxu0 0.0
    %228 = vmatpush1.xpose.msra.mxu0 0.0
    %229 = vmatprep.subr.mxu0 0.0
    %230 = vmatpush1.xpose.msra.mxu0 0.0
    %231 = vmatprep.subr.mxu0 0.0
    %232 = vmatpush1.xpose.msra.mxu0 0.0
    %233 = vmatprep.subr.mxu0 0.0
    %234 = vmatpush1.xpose.msra.mxu0 0.0
    %235 = vmatprep.subr.mxu0 0.0
    %236 = vmatpush1.xpose.msra.mxu0 0.0
    %237 = vmatprep.subr.mxu0 0.0
    %238 = vmatpush1.xpose.msra.mxu0 0.0
    %239 = vmatprep.subr.mxu0 0.0
    %240 = vmatpush1.xpose.msra.mxu0 0.0
    %241 = vmatprep.subr.mxu0 0.0
    %242 = vmatpush1.xpose.msra.mxu0 0.0
    %243 = vmatprep.subr.mxu0 0.0
    %244 = vmatpush1.xpose.msra.mxu0 0.0
    %245 = vmatprep.subr.mxu0 0.0
    %246 = vmatpush1.xpose.msra.mxu0 0.0
    %247 = vmatprep.subr.mxu0 0.0
    %248 = vmatpush1.xpose.msra.mxu0 0.0
    %249 = vmatprep.subr.mxu0 0.0
    %250 = vmatpush1.xpose.msra.mxu0 0.0
    %251 = vmatprep.subr.mxu0 0.0
    %252 = vmatpush1.xpose.msra.mxu0 0.0
    %253 = vmatprep.subr.mxu0 0.0
    %254 = vmatpush1.xpose.msra.mxu0 0.0
    %255 = vmatprep.subr.mxu0 0.0
    %256 = vmatpush1.xpose.msra.mxu0 0.0
    %257 = vmatprep.subr.mxu0 0.0
    %258 = vmatpush1.xpose.msra.mxu0 0.0
    %259 = vmatprep.subr.mxu0 0.0
    %260 = vmatpush1.xpose.msra.mxu0 0.0
    %261 = vmatprep.subr.mxu0 0.0
    %262 = vmatpush1.xpose.msra.mxu0 0.0
    %263 = vmatprep.subr.mxu0 0.0
    %264 = vmatpush1.xpose.msra.mxu0 0.0
    %265 = vmatprep.subr.mxu0 0.0
    %266 = vmatpush1.xpose.msra.mxu0 0.0
    %267 = vmatprep.subr.mxu0 0.0
    %268 = vmatpush1.xpose.msra.mxu0 0.0
    %269 = vmatprep.subr.mxu0 0.0
    %270 = vmatpush1.xpose.msra.mxu0 0.0
    %271 = vmatprep.subr.mxu0 0.0
    %272 = vmatpush1.xpose.msra.mxu0 0.0
    %273 = vmatprep.subr.mxu0 0.0
    %274 = vmatpush1.xpose.msra.mxu0 0.0
    %275 = vmatprep.subr.mxu0 0.0
    %276 = vmatpush1.xpose.msra.mxu0 0.0
    %277 = vmatprep.subr.mxu0 0.0
    %278 = vmatpush1.xpose.msra.mxu0 0.0
    %279 = vmatprep.mubr.f32.mxu0 0.0
    %280 = vmatmul.mubr.f32.gmra.mrb[0].mxu0 %v211
    %v281 = vpop.f32.mrb[0].mxu0
    %v282 = vadd.f32 0.0, %v281
    %v283 = vpop.f32.mrb[0].mxu0
    %284 = vdwg.mxu0
    %286 = vrot.lane.b32.xlu0 %v196, 96
    %v287 = vpop.permute.xlu0 %286
    %v289 = vsel %vm63, %v206, 0
    %v291 = vsel %vm63, %v287, 0
    %293 = vmatprep.subr.mxu0 0.0
    %294 = vmatpush1.xpose.msra.mxu0 %v291
    %295 = vmatprep.subr.mxu0 0.0
    %296 = vmatpush1.xpose.msra.mxu0 0.0
    %297 = vmatprep.subr.mxu0 0.0
    %298 = vmatpush1.xpose.msra.mxu0 0.0
    %299 = vmatprep.subr.mxu0 0.0
    %300 = vmatpush1.xpose.msra.mxu0 0.0
    %301 = vmatprep.subr.mxu0 0.0
    %302 = vmatpush1.xpose.msra.mxu0 0.0
    %303 = vmatprep.subr.mxu0 0.0
    %304 = vmatpush1.xpose.msra.mxu0 0.0
    %305 = vmatprep.subr.mxu0 0.0
    %306 = vmatpush1.xpose.msra.mxu0 0.0
    %307 = vmatprep.subr.mxu0 0.0
    %308 = vmatpush1.xpose.msra.mxu0 0.0
    %309 = vmatprep.subr.mxu0 0.0
    %310 = vmatpush1.xpose.msra.mxu0 0.0
    %311 = vmatprep.subr.mxu0 0.0
    %312 = vmatpush1.xpose.msra.mxu0 0.0
    %313 = vmatprep.subr.mxu0 0.0
    %314 = vmatpush1.xpose.msra.mxu0 0.0
    %315 = vmatprep.subr.mxu0 0.0
    %316 = vmatpush1.xpose.msra.mxu0 0.0
    %317 = vmatprep.subr.mxu0 0.0
    %318 = vmatpush1.xpose.msra.mxu0 0.0
    %319 = vmatprep.subr.mxu0 0.0
    %320 = vmatpush1.xpose.msra.mxu0 0.0
    %321 = vmatprep.subr.mxu0 0.0
    %322 = vmatpush1.xpose.msra.mxu0 0.0
    %323 = vmatprep.subr.mxu0 0.0
    %324 = vmatpush1.xpose.msra.mxu0 0.0
    %325 = vmatprep.subr.mxu0 0.0
    %326 = vmatpush1.xpose.msra.mxu0 0.0
    %327 = vmatprep.subr.mxu0 0.0
    %328 = vmatpush1.xpose.msra.mxu0 0.0
    %329 = vmatprep.subr.mxu0 0.0
    %330 = vmatpush1.xpose.msra.mxu0 0.0
    %331 = vmatprep.subr.mxu0 0.0
    %332 = vmatpush1.xpose.msra.mxu0 0.0
    %333 = vmatprep.subr.mxu0 0.0
    %334 = vmatpush1.xpose.msra.mxu0 0.0
    %335 = vmatprep.subr.mxu0 0.0
    %336 = vmatpush1.xpose.msra.mxu0 0.0
    %337 = vmatprep.subr.mxu0 0.0
    %338 = vmatpush1.xpose.msra.mxu0 0.0
    %339 = vmatprep.subr.mxu0 0.0
    %340 = vmatpush1.xpose.msra.mxu0 0.0
    %341 = vmatprep.subr.mxu0 0.0
    %342 = vmatpush1.xpose.msra.mxu0 0.0
    %343 = vmatprep.subr.mxu0 0.0
    %344 = vmatpush1.xpose.msra.mxu0 0.0
    %345 = vmatprep.subr.mxu0 0.0
    %346 = vmatpush1.xpose.msra.mxu0 0.0
    %347 = vmatprep.subr.mxu0 0.0
    %348 = vmatpush1.xpose.msra.mxu0 0.0
    %349 = vmatprep.subr.mxu0 0.0
    %350 = vmatpush1.xpose.msra.mxu0 0.0
    %351 = vmatprep.subr.mxu0 0.0
    %352 = vmatpush1.xpose.msra.mxu0 0.0
    %353 = vmatprep.subr.mxu0 0.0
    %354 = vmatpush1.xpose.msra.mxu0 0.0
    %355 = vmatprep.subr.mxu0 0.0
    %356 = vmatpush1.xpose.msra.mxu0 0.0
    %357 = vmatprep.mubr.f32.mxu0 0.0
    %358 = vmatmul.mubr.f32.gmra.mrb[0].mxu0 %v289
    %v359 = vpop.f32.mrb[0].mxu0
    %v360 = vadd.f32 0.0, %v359
    %v361 = vpop.f32.mrb[0].mxu0
    %362 = vdwg.mxu0
    %v363 = vmul.f32 %v282, 0.35355338
    %v364 = vmul.f32 %v360, 0.35355338
    %vm365 = vcmask 64512
    %v366 = vsel %vm365, %v363, -inf
    %367 = vmax.xlane.f32.xlu0 %v366
    %v368 = vpop.xlane.xlu0 %367
    %v369 = vsel %vm365, %v364, -inf
    %370 = vmax.xlane.f32.xlu0 %v369
    %v371 = vpop.xlane.xlu0 %370
    %v372 = vsub.f32 %v363, %v368
    %v373 = vsub.f32 %v364, %v371
    %v374 = vmul.f32 %v372, 1.442695
    %v375 = vpow.pop %v374
    %v376 = vmul.f32 %v373, 1.442695
    %v377 = vpow.pop %v376
    %v378 = vsel %vm365, %v375, 0.0
    %379 = vadd.xlane.f32.xlu0 %v378
    %v380 = vpop.xlane.xlu0 %379
    %v381 = vsel %vm365, %v377, 0.0
    %382 = vadd.xlane.f32.xlu0 %v381
    %v383 = vpop.xlane.xlu0 %382
    %v384 = vrcp.pop %v380
    %v385 = vrcp.pop %v383
    %v386 = vmul.f32 %v375, %v384
    %v387 = vmul.f32 %v377, %v385
    %389 = vrot.lane.b32.xlu0 %v204, 64
    %v390 = vpop.permute.xlu0 %389
    %v392 = vmul.f32 %v191, %v390
    %v393 = vmul.f32 %v196, %v390
    %vm394 = vcmp.ge.s32.totalorder %v200, 8
    %vm395 = vcmp.lt.s32.totalorder %v200, 16
    %vm396 = vmand %vm394, %vm395
    %v397 = vsel %vm396, 1.0, 0.0
    %v398 = vmul.f32 %v191, %v397
    %v399 = vmul.f32 %v196, %v397
    %v401 = vsel %vm63, %v398, 0
    %403 = vmatprep.subr.mxu0 0.0
    %404 = vmatpush1.xpose.msra.mxu0 %v213
    %405 = vmatprep.subr.mxu0 0.0
    %406 = vmatpush1.xpose.msra.mxu0 0.0
    %407 = vmatprep.subr.mxu0 0.0
    %408 = vmatpush1.xpose.msra.mxu0 0.0
    %409 = vmatprep.subr.mxu0 0.0
    %410 = vmatpush1.xpose.msra.mxu0 0.0
    %411 = vmatprep.subr.mxu0 0.0
    %412 = vmatpush1.xpose.msra.mxu0 0.0
    %413 = vmatprep.subr.mxu0 0.0
    %414 = vmatpush1.xpose.msra.mxu0 0.0
    %415 = vmatprep.subr.mxu0 0.0
    %416 = vmatpush1.xpose.msra.mxu0 0.0
    %417 = vmatprep.subr.mxu0 0.0
    %418 = vmatpush1.xpose.msra.mxu0 0.0
    %419 = vmatprep.subr.mxu0 0.0
    %420 = vmatpush1.xpose.msra.mxu0 0.0
    %421 = vmatprep.subr.mxu0 0.0
    %422 = vmatpush1.xpose.msra.mxu0 0.0
    %423 = vmatprep.subr.mxu0 0.0
    %424 = vmatpush1.xpose.msra.mxu0 0.0
    %425 = vmatprep.subr.mxu0 0.0
    %426 = vmatpush1.xpose.msra.mxu0 0.0
    %427 = vmatprep.subr.mxu0 0.0
    %428 = vmatpush1.xpose.msra.mxu0 0.0
    %429 = vmatprep.subr.mxu0 0.0
    %430 = vmatpush1.xpose.msra.mxu0 0.0
    %431 = vmatprep.subr.mxu0 0.0
    %432 = vmatpush1.xpose.msra.mxu0 0.0
    %433 = vmatprep.subr.mxu0 0.0
    %434 = vmatpush1.xpose.msra.mxu0 0.0
    %435 = vmatprep.subr.mxu0 0.0
    %436 = vmatpush1.xpose.msra.mxu0 0.0
    %437 = vmatprep.subr.mxu0 0.0
    %438 = vmatpush1.xpose.msra.mxu0 0.0
    %439 = vmatprep.subr.mxu0 0.0
    %440 = vmatpush1.xpose.msra.mxu0 0.0
    %441 = vmatprep.subr.mxu0 0.0
    %442 = vmatpush1.xpose.msra.mxu0 0.0
    %443 = vmatprep.subr.mxu0 0.0
    %444 = vmatpush1.xpose.msra.mxu0 0.0
    %445 = vmatprep.subr.mxu0 0.0
    %446 = vmatpush1.xpose.msra.mxu0 0.0
    %447 = vmatprep.subr.mxu0 0.0
    %448 = vmatpush1.xpose.msra.mxu0 0.0
    %449 = vmatprep.subr.mxu0 0.0
    %450 = vmatpush1.xpose.msra.mxu0 0.0
    %451 = vmatprep.subr.mxu0 0.0
    %452 = vmatpush1.xpose.msra.mxu0 0.0
    %453 = vmatprep.subr.mxu0 0.0
    %454 = vmatpush1.xpose.msra.mxu0 0.0
    %455 = vmatprep.subr.mxu0 0.0
    %456 = vmatpush1.xpose.msra.mxu0 0.0
    %457 = vmatprep.subr.mxu0 0.0
    %458 = vmatpush1.xpose.msra.mxu0 0.0
    %459 = vmatprep.subr.mxu0 0.0
    %460 = vmatpush1.xpose.msra.mxu0 0.0
    %461 = vmatprep.subr.mxu0 0.0
    %462 = vmatpush1.xpose.msra.mxu0 0.0
    %463 = vmatprep.subr.mxu0 0.0
    %464 = vmatpush1.xpose.msra.mxu0 0.0
    %465 = vmatprep.subr.mxu0 0.0
    %466 = vmatpush1.xpose.msra.mxu0 0.0
    %467 = vmatprep.mubr.f32.mxu0 0.0
    %468 = vmatmul.mubr.f32.gmra.mrb[0].mxu0 %v401
    %v469 = vpop.f32.mrb[0].mxu0
    %v470 = vadd.f32 0.0, %v469
    %v471 = vpop.f32.mrb[0].mxu0
    %472 = vdwg.mxu0
    %v474 = vsel %vm63, %v399, 0
    %476 = vmatprep.subr.mxu0 0.0
    %477 = vmatpush1.xpose.msra.mxu0 %v291
    %478 = vmatprep.subr.mxu0 0.0
    %479 = vmatpush1.xpose.msra.mxu0 0.0
    %480 = vmatprep.subr.mxu0 0.0
    %481 = vmatpush1.xpose.msra.mxu0 0.0
    %482 = vmatprep.subr.mxu0 0.0
    %483 = vmatpush1.xpose.msra.mxu0 0.0
    %484 = vmatprep.subr.mxu0 0.0
    %485 = vmatpush1.xpose.msra.mxu0 0.0
    %486 = vmatprep.subr.mxu0 0.0
    %487 = vmatpush1.xpose.msra.mxu0 0.0
    %488 = vmatprep.subr.mxu0 0.0
    %489 = vmatpush1.xpose.msra.mxu0 0.0
    %490 = vmatprep.subr.mxu0 0.0
    %491 = vmatpush1.xpose.msra.mxu0 0.0
    %492 = vmatprep.subr.mxu0 0.0
    %493 = vmatpush1.xpose.msra.mxu0 0.0
    %494 = vmatprep.subr.mxu0 0.0
    %495 = vmatpush1.xpose.msra.mxu0 0.0
    %496 = vmatprep.subr.mxu0 0.0
    %497 = vmatpush1.xpose.msra.mxu0 0.0
    %498 = vmatprep.subr.mxu0 0.0
    %499 = vmatpush1.xpose.msra.mxu0 0.0
    %500 = vmatprep.subr.mxu0 0.0
    %501 = vmatpush1.xpose.msra.mxu0 0.0
    %502 = vmatprep.subr.mxu0 0.0
    %503 = vmatpush1.xpose.msra.mxu0 0.0
    %504 = vmatprep.subr.mxu0 0.0
    %505 = vmatpush1.xpose.msra.mxu0 0.0
    %506 = vmatprep.subr.mxu0 0.0
    %507 = vmatpush1.xpose.msra.mxu0 0.0
    %508 = vmatprep.subr.mxu0 0.0
    %509 = vmatpush1.xpose.msra.mxu0 0.0
    %510 = vmatprep.subr.mxu0 0.0
    %511 = vmatpush1.xpose.msra.mxu0 0.0
    %512 = vmatprep.subr.mxu0 0.0
    %513 = vmatpush1.xpose.msra.mxu0 0.0
    %514 = vmatprep.subr.mxu0 0.0
    %515 = vmatpush1.xpose.msra.mxu0 0.0
    %516 = vmatprep.subr.mxu0 0.0
    %517 = vmatpush1.xpose.msra.mxu0 0.0
    %518 = vmatprep.subr.mxu0 0.0
    %519 = vmatpush1.xpose.msra.mxu0 0.0
    %520 = vmatprep.subr.mxu0 0.0
    %521 = vmatpush1.xpose.msra.mxu0 0.0
    %522 = vmatprep.subr.mxu0 0.0
    %523 = vmatpush1.xpose.msra.mxu0 0.0
    %524 = vmatprep.subr.mxu0 0.0
    %525 = vmatpush1.xpose.msra.mxu0 0.0
    %526 = vmatprep.subr.mxu0 0.0
    %527 = vmatpush1.xpose.msra.mxu0 0.0
    %528 = vmatprep.subr.mxu0 0.0
    %529 = vmatpush1.xpose.msra.mxu0 0.0
    %530 = vmatprep.subr.mxu0 0.0
    %531 = vmatpush1.xpose.msra.mxu0 0.0
    %532 = vmatprep.subr.mxu0 0.0
    %533 = vmatpush1.xpose.msra.mxu0 0.0
    %534 = vmatprep.subr.mxu0 0.0
    %535 = vmatpush1.xpose.msra.mxu0 0.0
    %536 = vmatprep.subr.mxu0 0.0
    %537 = vmatpush1.xpose.msra.mxu0 0.0
    %538 = vmatprep.subr.mxu0 0.0
    %539 = vmatpush1.xpose.msra.mxu0 0.0
    %540 = vmatprep.mubr.f32.mxu0 0.0
    %541 = vmatmul.mubr.f32.gmra.mrb[0].mxu0 %v474
    %v542 = vpop.f32.mrb[0].mxu0
    %v543 = vadd.f32 0.0, %v542
    %v544 = vpop.f32.mrb[0].mxu0
    %545 = vdwg.mxu0
    %v546 = vmul.f32 %v470, 0.35355338
    %v547 = vmul.f32 %v543, 0.35355338
    %v548 = vsel %vm365, %v546, -inf
    %549 = vmax.xlane.f32.xlu0 %v548
    %v550 = vpop.xlane.xlu0 %549
    %v551 = vsel %vm365, %v547, -inf
    %552 = vmax.xlane.f32.xlu0 %v551
    %v553 = vpop.xlane.xlu0 %552
    %v554 = vsub.f32 %v546, %v550
    %v555 = vsub.f32 %v547, %v553
    %v556 = vmul.f32 %v554, 1.442695
    %v557 = vpow.pop %v556
    %v558 = vmul.f32 %v555, 1.442695
    %v559 = vpow.pop %v558
    %v560 = vsel %vm365, %v557, 0.0
    %561 = vadd.xlane.f32.xlu0 %v560
    %v562 = vpop.xlane.xlu0 %561
    %v563 = vsel %vm365, %v559, 0.0
    %564 = vadd.xlane.f32.xlu0 %v563
    %v565 = vpop.xlane.xlu0 %564
    %v566 = vrcp.pop %v562
    %v567 = vrcp.pop %v565
    %v568 = vmul.f32 %v557, %v566
    %v569 = vmul.f32 %v559, %v567
    %571 = vrot.lane.b32.xlu0 %v397, 64
    %v572 = vpop.permute.xlu0 %571
    %v574 = vmul.f32 %v191, %v572
    %v575 = vmul.f32 %v196, %v572
    %577 = vrot.lane.b32.xlu0 %v574, 64
    %v578 = vpop.permute.xlu0 %577
    %v581 = vsel %vm365, %v568, 0
    %583 = vmatprep.subr.mxu0 0.0
    %584 = vmatpush1.msra.mxu0 %v578
    %585 = vmatprep.subr.mxu0 0.0
    %586 = vmatpush1.msra.mxu0 0.0
    %587 = vmatprep.subr.mxu0 0.0
    %588 = vmatpush1.msra.mxu0 0.0
    %589 = vmatprep.subr.mxu0 0.0
    %590 = vmatpush1.msra.mxu0 0.0
    %591 = vmatprep.subr.mxu0 0.0
    %592 = vmatpush1.msra.mxu0 0.0
    %593 = vmatprep.subr.mxu0 0.0
    %594 = vmatpush1.msra.mxu0 0.0
    %595 = vmatprep.subr.mxu0 0.0
    %596 = vmatpush1.msra.mxu0 0.0
    %597 = vmatprep.subr.mxu0 0.0
    %598 = vmatpush1.msra.mxu0 0.0
    %599 = vmatprep.subr.mxu0 0.0
    %600 = vmatpush1.msra.mxu0 0.0
    %601 = vmatprep.subr.mxu0 0.0
    %602 = vmatpush1.msra.mxu0 0.0
    %603 = vmatprep.subr.mxu0 0.0
    %604 = vmatpush1.msra.mxu0 0.0
    %605 = vmatprep.subr.mxu0 0.0
    %606 = vmatpush1.msra.mxu0 0.0
    %607 = vmatprep.subr.mxu0 0.0
    %608 = vmatpush1.msra.mxu0 0.0
    %609 = vmatprep.subr.mxu0 0.0
    %610 = vmatpush1.msra.mxu0 0.0
    %611 = vmatprep.subr.mxu0 0.0
    %612 = vmatpush1.msra.mxu0 0.0
    %613 = vmatprep.subr.mxu0 0.0
    %614 = vmatpush1.msra.mxu0 0.0
    %615 = vmatprep.subr.mxu0 0.0
    %616 = vmatpush1.msra.mxu0 0.0
    %617 = vmatprep.subr.mxu0 0.0
    %618 = vmatpush1.msra.mxu0 0.0
    %619 = vmatprep.subr.mxu0 0.0
    %620 = vmatpush1.msra.mxu0 0.0
    %621 = vmatprep.subr.mxu0 0.0
    %622 = vmatpush1.msra.mxu0 0.0
    %623 = vmatprep.subr.mxu0 0.0
    %624 = vmatpush1.msra.mxu0 0.0
    %625 = vmatprep.subr.mxu0 0.0
    %626 = vmatpush1.msra.mxu0 0.0
    %627 = vmatprep.subr.mxu0 0.0
    %628 = vmatpush1.msra.mxu0 0.0
    %629 = vmatprep.subr.mxu0 0.0
    %630 = vmatpush1.msra.mxu0 0.0
    %631 = vmatprep.subr.mxu0 0.0
    %632 = vmatpush1.msra.mxu0 0.0
    %633 = vmatprep.subr.mxu0 0.0
    %634 = vmatpush1.msra.mxu0 0.0
    %635 = vmatprep.subr.mxu0 0.0
    %636 = vmatpush1.msra.mxu0 0.0
    %637 = vmatprep.subr.mxu0 0.0
    %638 = vmatpush1.msra.mxu0 0.0
    %639 = vmatprep.subr.mxu0 0.0
    %640 = vmatpush1.msra.mxu0 0.0
    %641 = vmatprep.subr.mxu0 0.0
    %642 = vmatpush1.msra.mxu0 0.0
    %643 = vmatprep.subr.mxu0 0.0
    %644 = vmatpush1.msra.mxu0 0.0
    %645 = vmatprep.subr.mxu0 0.0
    %646 = vmatpush1.msra.mxu0 0.0
    %647 = vmatprep.mubr.f32.mxu0 0.0
    %648 = vmatmul.mubr.f32.gmra.mrb[0].mxu0 %v581
    %v649 = vpop.f32.mrb[0].mxu0
    %v650 = vadd.f32 0.0, %v649
    %v651 = vpop.f32.mrb[0].mxu0
    %652 = vdwg.mxu0
    %654 = vrot.lane.b32.xlu0 %v575, 64
    %v655 = vpop.permute.xlu0 %654
    %v658 = vsel %vm365, %v569, 0
    %660 = vmatprep.subr.mxu0 0.0
    %661 = vmatpush1.msra.mxu0 %v655
    %662 = vmatprep.subr.mxu0 0.0
    %663 = vmatpush1.msra.mxu0 0.0
    %664 = vmatprep.subr.mxu0 0.0
    %665 = vmatpush1.msra.mxu0 0.0
    %666 = vmatprep.subr.mxu0 0.0
    %667 = vmatpush1.msra.mxu0 0.0
    %668 = vmatprep.subr.mxu0 0.0
    %669 = vmatpush1.msra.mxu0 0.0
    %670 = vmatprep.subr.mxu0 0.0
    %671 = vmatpush1.msra.mxu0 0.0
    %672 = vmatprep.subr.mxu0 0.0
    %673 = vmatpush1.msra.mxu0 0.0
    %674 = vmatprep.subr.mxu0 0.0
    %675 = vmatpush1.msra.mxu0 0.0
    %676 = vmatprep.subr.mxu0 0.0
    %677 = vmatpush1.msra.mxu0 0.0
    %678 = vmatprep.subr.mxu0 0.0
    %679 = vmatpush1.msra.mxu0 0.0
    %680 = vmatprep.subr.mxu0 0.0
    %681 = vmatpush1.msra.mxu0 0.0
    %682 = vmatprep.subr.mxu0 0.0
    %683 = vmatpush1.msra.mxu0 0.0
    %684 = vmatprep.subr.mxu0 0.0
    %685 = vmatpush1.msra.mxu0 0.0
    %686 = vmatprep.subr.mxu0 0.0
    %687 = vmatpush1.msra.mxu0 0.0
    %688 = vmatprep.subr.mxu0 0.0
    %689 = vmatpush1.msra.mxu0 0.0
    %690 = vmatprep.subr.mxu0 0.0
    %691 = vmatpush1.msra.mxu0 0.0
    %692 = vmatprep.subr.mxu0 0.0
    %693 = vmatpush1.msra.mxu0 0.0
    %694 = vmatprep.subr.mxu0 0.0
    %695 = vmatpush1.msra.mxu0 0.0
    %696 = vmatprep.subr.mxu0 0.0
    %697 = vmatpush1.msra.mxu0 0.0
    %698 = vmatprep.subr.mxu0 0.0
    %699 = vmatpush1.msra.mxu0 0.0
    %700 = vmatprep.subr.mxu0 0.0
    %701 = vmatpush1.msra.mxu0 0.0
    %702 = vmatprep.subr.mxu0 0.0
    %703 = vmatpush1.msra.mxu0 0.0
    %704 = vmatprep.subr.mxu0 0.0
    %705 = vmatpush1.msra.mxu0 0.0
    %706 = vmatprep.subr.mxu0 0.0
    %707 = vmatpush1.msra.mxu0 0.0
    %708 = vmatprep.subr.mxu0 0.0
    %709 = vmatpush1.msra.mxu0 0.0
    %710 = vmatprep.subr.mxu0 0.0
    %711 = vmatpush1.msra.mxu0 0.0
    %712 = vmatprep.subr.mxu0 0.0
    %713 = vmatpush1.msra.mxu0 0.0
    %714 = vmatprep.subr.mxu0 0.0
    %715 = vmatpush1.msra.mxu0 0.0
    %716 = vmatprep.subr.mxu0 0.0
    %717 = vmatpush1.msra.mxu0 0.0
    %718 = vmatprep.subr.mxu0 0.0
    %719 = vmatpush1.msra.mxu0 0.0
    %720 = vmatprep.subr.mxu0 0.0
    %721 = vmatpush1.msra.mxu0 0.0
    %722 = vmatprep.subr.mxu0 0.0
    %723 = vmatpush1.msra.mxu0 0.0
    %724 = vmatprep.mubr.f32.mxu0 0.0
    %725 = vmatmul.mubr.f32.gmra.mrb[0].mxu0 %v658
    %v726 = vpop.f32.mrb[0].mxu0
    %v727 = vadd.f32 0.0, %v726
    %v728 = vpop.f32.mrb[0].mxu0
    %729 = vdwg.mxu0
    %731 = vrot.lane.b32.xlu0 %v392, 64
    %v732 = vpop.permute.xlu0 %731
    %v735 = vsel %vm365, %v386, 0
    %737 = vmatprep.subr.mxu0 0.0
    %738 = vmatpush1.msra.mxu0 %v732
    %739 = vmatprep.subr.mxu0 0.0
    %740 = vmatpush1.msra.mxu0 0.0
    %741 = vmatprep.subr.mxu0 0.0
    %742 = vmatpush1.msra.mxu0 0.0
    %743 = vmatprep.subr.mxu0 0.0
    %744 = vmatpush1.msra.mxu0 0.0
    %745 = vmatprep.subr.mxu0 0.0
    %746 = vmatpush1.msra.mxu0 0.0
    %747 = vmatprep.subr.mxu0 0.0
    %748 = vmatpush1.msra.mxu0 0.0
    %749 = vmatprep.subr.mxu0 0.0
    %750 = vmatpush1.msra.mxu0 0.0
    %751 = vmatprep.subr.mxu0 0.0
    %752 = vmatpush1.msra.mxu0 0.0
    %753 = vmatprep.subr.mxu0 0.0
    %754 = vmatpush1.msra.mxu0 0.0
    %755 = vmatprep.subr.mxu0 0.0
    %756 = vmatpush1.msra.mxu0 0.0
    %757 = vmatprep.subr.mxu0 0.0
    %758 = vmatpush1.msra.mxu0 0.0
    %759 = vmatprep.subr.mxu0 0.0
    %760 = vmatpush1.msra.mxu0 0.0
    %761 = vmatprep.subr.mxu0 0.0
    %762 = vmatpush1.msra.mxu0 0.0
    %763 = vmatprep.subr.mxu0 0.0
    %764 = vmatpush1.msra.mxu0 0.0
    %765 = vmatprep.subr.mxu0 0.0
    %766 = vmatpush1.msra.mxu0 0.0
    %767 = vmatprep.subr.mxu0 0.0
    %768 = vmatpush1.msra.mxu0 0.0
    %769 = vmatprep.subr.mxu0 0.0
    %770 = vmatpush1.msra.mxu0 0.0
    %771 = vmatprep.subr.mxu0 0.0
    %772 = vmatpush1.msra.mxu0 0.0
    %773 = vmatprep.subr.mxu0 0.0
    %774 = vmatpush1.msra.mxu0 0.0
    %775 = vmatprep.subr.mxu0 0.0
    %776 = vmatpush1.msra.mxu0 0.0
    %777 = vmatprep.subr.mxu0 0.0
    %778 = vmatpush1.msra.mxu0 0.0
    %779 = vmatprep.subr.mxu0 0.0
    %780 = vmatpush1.msra.mxu0 0.0
    %781 = vmatprep.subr.mxu0 0.0
    %782 = vmatpush1.msra.mxu0 0.0
    %783 = vmatprep.subr.mxu0 0.0
    %784 = vmatpush1.msra.mxu0 0.0
    %785 = vmatprep.subr.mxu0 0.0
    %786 = vmatpush1.msra.mxu0 0.0
    %787 = vmatprep.subr.mxu0 0.0
    %788 = vmatpush1.msra.mxu0 0.0
    %789 = vmatprep.subr.mxu0 0.0
    %790 = vmatpush1.msra.mxu0 0.0
    %791 = vmatprep.subr.mxu0 0.0
    %792 = vmatpush1.msra.mxu0 0.0
    %793 = vmatprep.subr.mxu0 0.0
    %794 = vmatpush1.msra.mxu0 0.0
    %795 = vmatprep.subr.mxu0 0.0
    %796 = vmatpush1.msra.mxu0 0.0
    %797 = vmatprep.subr.mxu0 0.0
    %798 = vmatpush1.msra.mxu0 0.0
    %799 = vmatprep.subr.mxu0 0.0
    %800 = vmatpush1.msra.mxu0 0.0
    %801 = vmatprep.mubr.f32.mxu0 0.0
    %802 = vmatmul.mubr.f32.gmra.mrb[0].mxu0 %v735
    %v803 = vpop.f32.mrb[0].mxu0
    %v804 = vadd.f32 %v650, %v803
    %v805 = vpop.f32.mrb[0].mxu0
    %806 = vdwg.mxu0
    %808 = vrot.lane.b32.xlu0 %v393, 64
    %v809 = vpop.permute.xlu0 %808
    %v812 = vsel %vm365, %v387, 0
    %814 = vmatprep.subr.mxu0 0.0
    %815 = vmatpush1.msra.mxu0 %v809
    %816 = vmatprep.subr.mxu0 0.0
    %817 = vmatpush1.msra.mxu0 0.0
    %818 = vmatprep.subr.mxu0 0.0
    %819 = vmatpush1.msra.mxu0 0.0
    %820 = vmatprep.subr.mxu0 0.0
    %821 = vmatpush1.msra.mxu0 0.0
    %822 = vmatprep.subr.mxu0 0.0
    %823 = vmatpush1.msra.mxu0 0.0
    %824 = vmatprep.subr.mxu0 0.0
    %825 = vmatpush1.msra.mxu0 0.0
    %826 = vmatprep.subr.mxu0 0.0
    %827 = vmatpush1.msra.mxu0 0.0
    %828 = vmatprep.subr.mxu0 0.0
    %829 = vmatpush1.msra.mxu0 0.0
    %830 = vmatprep.subr.mxu0 0.0
    %831 = vmatpush1.msra.mxu0 0.0
    %832 = vmatprep.subr.mxu0 0.0
    %833 = vmatpush1.msra.mxu0 0.0
    %834 = vmatprep.subr.mxu0 0.0
    %835 = vmatpush1.msra.mxu0 0.0
    %836 = vmatprep.subr.mxu0 0.0
    %837 = vmatpush1.msra.mxu0 0.0
    %838 = vmatprep.subr.mxu0 0.0
    %839 = vmatpush1.msra.mxu0 0.0
    %840 = vmatprep.subr.mxu0 0.0
    %841 = vmatpush1.msra.mxu0 0.0
    %842 = vmatprep.subr.mxu0 0.0
    %843 = vmatpush1.msra.mxu0 0.0
    %844 = vmatprep.subr.mxu0 0.0
    %845 = vmatpush1.msra.mxu0 0.0
    %846 = vmatprep.subr.mxu0 0.0
    %847 = vmatpush1.msra.mxu0 0.0
    %848 = vmatprep.subr.mxu0 0.0
    %849 = vmatpush1.msra.mxu0 0.0
    %850 = vmatprep.subr.mxu0 0.0
    %851 = vmatpush1.msra.mxu0 0.0
    %852 = vmatprep.subr.mxu0 0.0
    %853 = vmatpush1.msra.mxu0 0.0
    %854 = vmatprep.subr.mxu0 0.0
    %855 = vmatpush1.msra.mxu0 0.0
    %856 = vmatprep.subr.mxu0 0.0
    %857 = vmatpush1.msra.mxu0 0.0
    %858 = vmatprep.subr.mxu0 0.0
    %859 = vmatpush1.msra.mxu0 0.0
    %860 = vmatprep.subr.mxu0 0.0
    %861 = vmatpush1.msra.mxu0 0.0
    %862 = vmatprep.subr.mxu0 0.0
    %863 = vmatpush1.msra.mxu0 0.0
    %864 = vmatprep.subr.mxu0 0.0
    %865 = vmatpush1.msra.mxu0 0.0
    %866 = vmatprep.subr.mxu0 0.0
    %867 = vmatpush1.msra.mxu0 0.0
    %868 = vmatprep.subr.mxu0 0.0
    %869 = vmatpush1.msra.mxu0 0.0
    %870 = vmatprep.subr.mxu0 0.0
    %871 = vmatpush1.msra.mxu0 0.0
    %872 = vmatprep.subr.mxu0 0.0
    %873 = vmatpush1.msra.mxu0 0.0
    %874 = vmatprep.subr.mxu0 0.0
    %875 = vmatpush1.msra.mxu0 0.0
    %876 = vmatprep.subr.mxu0 0.0
    %877 = vmatpush1.msra.mxu0 0.0
    %878 = vmatprep.mubr.f32.mxu0 0.0
    %879 = vmatmul.mubr.f32.gmra.mrb[0].mxu0 %v812
    %v880 = vpop.f32.mrb[0].mxu0
    %v881 = vadd.f32 %v727, %v880
    %v882 = vpop.f32.mrb[0].mxu0
    %883 = vdwg.mxu0
    %vm884 = vcmp.ge.s32.totalorder %v200, 16
    %vm885 = vcmp.lt.s32.totalorder %v200, 24
    %vm886 = vmand %vm884, %vm885
    %v887 = vsel %vm886, 1.0, 0.0
    %v888 = vmul.f32 %v191, %v887
    %v889 = vmul.f32 %v196, %v887
    %v891 = vsel %vm63, %v888, 0
    %893 = vmatprep.subr.mxu0 0.0
    %894 = vmatpush1.xpose.msra.mxu0 %v213
    %895 = vmatprep.subr.mxu0 0.0
    %896 = vmatpush1.xpose.msra.mxu0 0.0
    %897 = vmatprep.subr.mxu0 0.0
    %898 = vmatpush1.xpose.msra.mxu0 0.0
    %899 = vmatprep.subr.mxu0 0.0
    %900 = vmatpush1.xpose.msra.mxu0 0.0
    %901 = vmatprep.subr.mxu0 0.0
    %902 = vmatpush1.xpose.msra.mxu0 0.0
    %903 = vmatprep.subr.mxu0 0.0
    %904 = vmatpush1.xpose.msra.mxu0 0.0
    %905 = vmatprep.subr.mxu0 0.0
    %906 = vmatpush1.xpose.msra.mxu0 0.0
    %907 = vmatprep.subr.mxu0 0.0
    %908 = vmatpush1.xpose.msra.mxu0 0.0
    %909 = vmatprep.subr.mxu0 0.0
    %910 = vmatpush1.xpose.msra.mxu0 0.0
    %911 = vmatprep.subr.mxu0 0.0
    %912 = vmatpush1.xpose.msra.mxu0 0.0
    %913 = vmatprep.subr.mxu0 0.0
    %914 = vmatpush1.xpose.msra.mxu0 0.0
    %915 = vmatprep.subr.mxu0 0.0
    %916 = vmatpush1.xpose.msra.mxu0 0.0
    %917 = vmatprep.subr.mxu0 0.0
    %918 = vmatpush1.xpose.msra.mxu0 0.0
    %919 = vmatprep.subr.mxu0 0.0
    %920 = vmatpush1.xpose.msra.mxu0 0.0
    %921 = vmatprep.subr.mxu0 0.0
    %922 = vmatpush1.xpose.msra.mxu0 0.0
    %923 = vmatprep.subr.mxu0 0.0
    %924 = vmatpush1.xpose.msra.mxu0 0.0
    %925 = vmatprep.subr.mxu0 0.0
    %926 = vmatpush1.xpose.msra.mxu0 0.0
    %927 = vmatprep.subr.mxu0 0.0
    %928 = vmatpush1.xpose.msra.mxu0 0.0
    %929 = vmatprep.subr.mxu0 0.0
    %930 = vmatpush1.xpose.msra.mxu0 0.0
    %931 = vmatprep.subr.mxu0 0.0
    %932 = vmatpush1.xpose.msra.mxu0 0.0
    %933 = vmatprep.subr.mxu0 0.0
    %934 = vmatpush1.xpose.msra.mxu0 0.0
    %935 = vmatprep.subr.mxu0 0.0
    %936 = vmatpush1.xpose.msra.mxu0 0.0
    %937 = vmatprep.subr.mxu0 0.0
    %938 = vmatpush1.xpose.msra.mxu0 0.0
    %939 = vmatprep.subr.mxu0 0.0
    %940 = vmatpush1.xpose.msra.mxu0 0.0
    %941 = vmatprep.subr.mxu0 0.0
    %942 = vmatpush1.xpose.msra.mxu0 0.0
    %943 = vmatprep.subr.mxu0 0.0
    %944 = vmatpush1.xpose.msra.mxu0 0.0
    %945 = vmatprep.subr.mxu0 0.0
    %946 = vmatpush1.xpose.msra.mxu0 0.0
    %947 = vmatprep.subr.mxu0 0.0
    %948 = vmatpush1.xpose.msra.mxu0 0.0
    %949 = vmatprep.subr.mxu0 0.0
    %950 = vmatpush1.xpose.msra.mxu0 0.0
    %951 = vmatprep.subr.mxu0 0.0
    %952 = vmatpush1.xpose.msra.mxu0 0.0
    %953 = vmatprep.subr.mxu0 0.0
    %954 = vmatpush1.xpose.msra.mxu0 0.0
    %955 = vmatprep.subr.mxu0 0.0
    %956 = vmatpush1.xpose.msra.mxu0 0.0
    %957 = vmatprep.mubr.f32.mxu0 0.0
    %958 = vmatmul.mubr.f32.gmra.mrb[0].mxu0 %v891
    %v959 = vpop.f32.mrb[0].mxu0
    %v960 = vadd.f32 0.0, %v959
    %v961 = vpop.f32.mrb[0].mxu0
    %962 = vdwg.mxu0
    %v964 = vsel %vm63, %v889, 0
    %966 = vmatprep.subr.mxu0 0.0
    %967 = vmatpush1.xpose.msra.mxu0 %v291
    %968 = vmatprep.subr.mxu0 0.0
    %969 = vmatpush1.xpose.msra.mxu0 0.0
    %970 = vmatprep.subr.mxu0 0.0
    %971 = vmatpush1.xpose.msra.mxu0 0.0
    %972 = vmatprep.subr.mxu0 0.0
    %973 = vmatpush1.xpose.msra.mxu0 0.0
    %974 = vmatprep.subr.mxu0 0.0
    %975 = vmatpush1.xpose.msra.mxu0 0.0
    %976 = vmatprep.subr.mxu0 0.0
    %977 = vmatpush1.xpose.msra.mxu0 0.0
    %978 = vmatprep.subr.mxu0 0.0
    %979 = vmatpush1.xpose.msra.mxu0 0.0
    %980 = vmatprep.subr.mxu0 0.0
    %981 = vmatpush1.xpose.msra.mxu0 0.0
    %982 = vmatprep.subr.mxu0 0.0
    %983 = vmatpush1.xpose.msra.mxu0 0.0
    %984 = vmatprep.subr.mxu0 0.0
    %985 = vmatpush1.xpose.msra.mxu0 0.0
    %986 = vmatprep.subr.mxu0 0.0
    %987 = vmatpush1.xpose.msra.mxu0 0.0
    %988 = vmatprep.subr.mxu0 0.0
    %989 = vmatpush1.xpose.msra.mxu0 0.0
    %990 = vmatprep.subr.mxu0 0.0
    %991 = vmatpush1.xpose.msra.mxu0 0.0
    %992 = vmatprep.subr.mxu0 0.0
    %993 = vmatpush1.xpose.msra.mxu0 0.0
    %994 = vmatprep.subr.mxu0 0.0
    %995 = vmatpush1.xpose.msra.mxu0 0.0
    %996 = vmatprep.subr.mxu0 0.0
    %997 = vmatpush1.xpose.msra.mxu0 0.0
    %998 = vmatprep.subr.mxu0 0.0
    %999 = vmatpush1.xpose.msra.mxu0 0.0
    %1000 = vmatprep.subr.mxu0 0.0
    %1001 = vmatpush1.xpose.msra.mxu0 0.0
    %1002 = vmatprep.subr.mxu0 0.0
    %1003 = vmatpush1.xpose.msra.mxu0 0.0
    %1004 = vmatprep.subr.mxu0 0.0
    %1005 = vmatpush1.xpose.msra.mxu0 0.0
    %1006 = vmatprep.subr.mxu0 0.0
    %1007 = vmatpush1.xpose.msra.mxu0 0.0
    %1008 = vmatprep.subr.mxu0 0.0
    %1009 = vmatpush1.xpose.msra.mxu0 0.0
    %1010 = vmatprep.subr.mxu0 0.0
    %1011 = vmatpush1.xpose.msra.mxu0 0.0
    %1012 = vmatprep.subr.mxu0 0.0
    %1013 = vmatpush1.xpose.msra.mxu0 0.0
    %1014 = vmatprep.subr.mxu0 0.0
    %1015 = vmatpush1.xpose.msra.mxu0 0.0
    %1016 = vmatprep.subr.mxu0 0.0
    %1017 = vmatpush1.xpose.msra.mxu0 0.0
    %1018 = vmatprep.subr.mxu0 0.0
    %1019 = vmatpush1.xpose.msra.mxu0 0.0
    %1020 = vmatprep.subr.mxu0 0.0
    %1021 = vmatpush1.xpose.msra.mxu0 0.0
    %1022 = vmatprep.subr.mxu0 0.0
    %1023 = vmatpush1.xpose.msra.mxu0 0.0
    %1024 = vmatprep.subr.mxu0 0.0
    %1025 = vmatpush1.xpose.msra.mxu0 0.0
    %1026 = vmatprep.subr.mxu0 0.0
    %1027 = vmatpush1.xpose.msra.mxu0 0.0
    %1028 = vmatprep.subr.mxu0 0.0
    %1029 = vmatpush1.xpose.msra.mxu0 0.0
    %1030 = vmatprep.mubr.f32.mxu0 0.0
    %1031 = vmatmul.mubr.f32.gmra.mrb[0].mxu0 %v964
    %v1032 = vpop.f32.mrb[0].mxu0
    %v1033 = vadd.f32 0.0, %v1032
    %v1034 = vpop.f32.mrb[0].mxu0
    %1035 = vdwg.mxu0
    %v1036 = vmul.f32 %v960, 0.35355338
    %v1037 = vmul.f32 %v1033, 0.35355338
    %v1038 = vsel %vm365, %v1036, -inf
    %1039 = vmax.xlane.f32.xlu0 %v1038
    %v1040 = vpop.xlane.xlu0 %1039
    %v1041 = vsel %vm365, %v1037, -inf
    %1042 = vmax.xlane.f32.xlu0 %v1041
    %v1043 = vpop.xlane.xlu0 %1042
    %v1044 = vsub.f32 %v1036, %v1040
    %v1045 = vsub.f32 %v1037, %v1043
    %v1046 = vmul.f32 %v1044, 1.442695
    %v1047 = vpow.pop %v1046
    %v1048 = vmul.f32 %v1045, 1.442695
    %v1049 = vpow.pop %v1048
    %v1050 = vsel %vm365, %v1047, 0.0
    %1051 = vadd.xlane.f32.xlu0 %v1050
    %v1052 = vpop.xlane.xlu0 %1051
    %v1053 = vsel %vm365, %v1049, 0.0
    %1054 = vadd.xlane.f32.xlu0 %v1053
    %v1055 = vpop.xlane.xlu0 %1054
    %v1056 = vrcp.pop %v1052
    %v1057 = vrcp.pop %v1055
    %v1058 = vmul.f32 %v1047, %v1056
    %v1059 = vmul.f32 %v1049, %v1057
    %1061 = vrot.lane.b32.xlu0 %v887, 64
    %v1062 = vpop.permute.xlu0 %1061
    %v1064 = vmul.f32 %v191, %v1062
    %v1065 = vmul.f32 %v196, %v1062
    %1067 = vrot.lane.b32.xlu0 %v1064, 64
    %v1068 = vpop.permute.xlu0 %1067
    %v1071 = vsel %vm365, %v1058, 0
    %1073 = vmatprep.subr.mxu0 0.0
    %1074 = vmatpush1.msra.mxu0 %v1068
    %1075 = vmatprep.subr.mxu0 0.0
    %1076 = vmatpush1.msra.mxu0 0.0
    %1077 = vmatprep.subr.mxu0 0.0
    %1078 = vmatpush1.msra.mxu0 0.0
    %1079 = vmatprep.subr.mxu0 0.0
    %1080 = vmatpush1.msra.mxu0 0.0
    %1081 = vmatprep.subr.mxu0 0.0
    %1082 = vmatpush1.msra.mxu0 0.0
    %1083 = vmatprep.subr.mxu0 0.0
    %1084 = vmatpush1.msra.mxu0 0.0
    %1085 = vmatprep.subr.mxu0 0.0
    %1086 = vmatpush1.msra.mxu0 0.0
    %1087 = vmatprep.subr.mxu0 0.0
    %1088 = vmatpush1.msra.mxu0 0.0
    %1089 = vmatprep.subr.mxu0 0.0
    %1090 = vmatpush1.msra.mxu0 0.0
    %1091 = vmatprep.subr.mxu0 0.0
    %1092 = vmatpush1.msra.mxu0 0.0
    %1093 = vmatprep.subr.mxu0 0.0
    %1094 = vmatpush1.msra.mxu0 0.0
    %1095 = vmatprep.subr.mxu0 0.0
    %1096 = vmatpush1.msra.mxu0 0.0
    %1097 = vmatprep.subr.mxu0 0.0
    %1098 = vmatpush1.msra.mxu0 0.0
    %1099 = vmatprep.subr.mxu0 0.0
    %1100 = vmatpush1.msra.mxu0 0.0
    %1101 = vmatprep.subr.mxu0 0.0
    %1102 = vmatpush1.msra.mxu0 0.0
    %1103 = vmatprep.subr.mxu0 0.0
    %1104 = vmatpush1.msra.mxu0 0.0
    %1105 = vmatprep.subr.mxu0 0.0
    %1106 = vmatpush1.msra.mxu0 0.0
    %1107 = vmatprep.subr.mxu0 0.0
    %1108 = vmatpush1.msra.mxu0 0.0
    %1109 = vmatprep.subr.mxu0 0.0
    %1110 = vmatpush1.msra.mxu0 0.0
    %1111 = vmatprep.subr.mxu0 0.0
    %1112 = vmatpush1.msra.mxu0 0.0
    %1113 = vmatprep.subr.mxu0 0.0
    %1114 = vmatpush1.msra.mxu0 0.0
    %1115 = vmatprep.subr.mxu0 0.0
    %1116 = vmatpush1.msra.mxu0 0.0
    %1117 = vmatprep.subr.mxu0 0.0
    %1118 = vmatpush1.msra.mxu0 0.0
    %1119 = vmatprep.subr.mxu0 0.0
    %1120 = vmatpush1.msra.mxu0 0.0
    %1121 = vmatprep.subr.mxu0 0.0
    %1122 = vmatpush1.msra.mxu0 0.0
    %1123 = vmatprep.subr.mxu0 0.0
    %1124 = vmatpush1.msra.mxu0 0.0
    %1125 = vmatprep.subr.mxu0 0.0
    %1126 = vmatpush1.msra.mxu0 0.0
    %1127 = vmatprep.subr.mxu0 0.0
    %1128 = vmatpush1.msra.mxu0 0.0
    %1129 = vmatprep.subr.mxu0 0.0
    %1130 = vmatpush1.msra.mxu0 0.0
    %1131 = vmatprep.subr.mxu0 0.0
    %1132 = vmatpush1.msra.mxu0 0.0
    %1133 = vmatprep.subr.mxu0 0.0
    %1134 = vmatpush1.msra.mxu0 0.0
    %1135 = vmatprep.subr.mxu0 0.0
    %1136 = vmatpush1.msra.mxu0 0.0
    %1137 = vmatprep.mubr.f32.mxu0 0.0
    %1138 = vmatmul.mubr.f32.gmra.mrb[0].mxu0 %v1071
    %v1139 = vpop.f32.mrb[0].mxu0
    %v1140 = vadd.f32 0.0, %v1139
    %v1141 = vpop.f32.mrb[0].mxu0
    %1142 = vdwg.mxu0
    %1144 = vrot.lane.b32.xlu0 %v1065, 64
    %v1145 = vpop.permute.xlu0 %1144
    %v1148 = vsel %vm365, %v1059, 0
    %1150 = vmatprep.subr.mxu0 0.0
    %1151 = vmatpush1.msra.mxu0 %v1145
    %1152 = vmatprep.subr.mxu0 0.0
    %1153 = vmatpush1.msra.mxu0 0.0
    %1154 = vmatprep.subr.mxu0 0.0
    %1155 = vmatpush1.msra.mxu0 0.0
    %1156 = vmatprep.subr.mxu0 0.0
    %1157 = vmatpush1.msra.mxu0 0.0
    %1158 = vmatprep.subr.mxu0 0.0
    %1159 = vmatpush1.msra.mxu0 0.0
    %1160 = vmatprep.subr.mxu0 0.0
    %1161 = vmatpush1.msra.mxu0 0.0
    %1162 = vmatprep.subr.mxu0 0.0
    %1163 = vmatpush1.msra.mxu0 0.0
    %1164 = vmatprep.subr.mxu0 0.0
    %1165 = vmatpush1.msra.mxu0 0.0
    %1166 = vmatprep.subr.mxu0 0.0
    %1167 = vmatpush1.msra.mxu0 0.0
    %1168 = vmatprep.subr.mxu0 0.0
    %1169 = vmatpush1.msra.mxu0 0.0
    %1170 = vmatprep.subr.mxu0 0.0
    %1171 = vmatpush1.msra.mxu0 0.0
    %1172 = vmatprep.subr.mxu0 0.0
    %1173 = vmatpush1.msra.mxu0 0.0
    %1174 = vmatprep.subr.mxu0 0.0
    %1175 = vmatpush1.msra.mxu0 0.0
    %1176 = vmatprep.subr.mxu0 0.0
    %1177 = vmatpush1.msra.mxu0 0.0
    %1178 = vmatprep.subr.mxu0 0.0
    %1179 = vmatpush1.msra.mxu0 0.0
    %1180 = vmatprep.subr.mxu0 0.0
    %1181 = vmatpush1.msra.mxu0 0.0
    %1182 = vmatprep.subr.mxu0 0.0
    %1183 = vmatpush1.msra.mxu0 0.0
    %1184 = vmatprep.subr.mxu0 0.0
    %1185 = vmatpush1.msra.mxu0 0.0
    %1186 = vmatprep.subr.mxu0 0.0
    %1187 = vmatpush1.msra.mxu0 0.0
    %1188 = vmatprep.subr.mxu0 0.0
    %1189 = vmatpush1.msra.mxu0 0.0
    %1190 = vmatprep.subr.mxu0 0.0
    %1191 = vmatpush1.msra.mxu0 0.0
    %1192 = vmatprep.subr.mxu0 0.0
    %1193 = vmatpush1.msra.mxu0 0.0
    %1194 = vmatprep.subr.mxu0 0.0
    %1195 = vmatpush1.msra.mxu0 0.0
    %1196 = vmatprep.subr.mxu0 0.0
    %1197 = vmatpush1.msra.mxu0 0.0
    %1198 = vmatprep.subr.mxu0 0.0
    %1199 = vmatpush1.msra.mxu0 0.0
    %1200 = vmatprep.subr.mxu0 0.0
    %1201 = vmatpush1.msra.mxu0 0.0
    %1202 = vmatprep.subr.mxu0 0.0
    %1203 = vmatpush1.msra.mxu0 0.0
    %1204 = vmatprep.subr.mxu0 0.0
    %1205 = vmatpush1.msra.mxu0 0.0
    %1206 = vmatprep.subr.mxu0 0.0
    %1207 = vmatpush1.msra.mxu0 0.0
    %1208 = vmatprep.subr.mxu0 0.0
    %1209 = vmatpush1.msra.mxu0 0.0
    %1210 = vmatprep.subr.mxu0 0.0
    %1211 = vmatpush1.msra.mxu0 0.0
    %1212 = vmatprep.subr.mxu0 0.0
    %1213 = vmatpush1.msra.mxu0 0.0
    %1214 = vmatprep.mubr.f32.mxu0 0.0
    %1215 = vmatmul.mubr.f32.gmra.mrb[0].mxu0 %v1148
    %v1216 = vpop.f32.mrb[0].mxu0
    %v1217 = vadd.f32 0.0, %v1216
    %v1218 = vpop.f32.mrb[0].mxu0
    %1219 = vdwg.mxu0
    %v1220 = vadd.f32 %v804, %v1140
    %v1221 = vadd.f32 %v881, %v1217
    %vm1222 = vcmp.ge.s32.totalorder %v200, 24
    %vm1223 = vcmp.lt.s32.totalorder %v200, 32
    %vm1224 = vmand %vm1222, %vm1223
    %v1225 = vsel %vm1224, 1.0, 0.0
    %v1226 = vmul.f32 %v191, %v1225
    %v1227 = vmul.f32 %v196, %v1225
    %v1229 = vsel %vm63, %v1226, 0
    %1231 = vmatprep.subr.mxu0 0.0
    %1232 = vmatpush1.xpose.msra.mxu0 %v213
    %1233 = vmatprep.subr.mxu0 0.0
    %1234 = vmatpush1.xpose.msra.mxu0 0.0
    %1235 = vmatprep.subr.mxu0 0.0
    %1236 = vmatpush1.xpose.msra.mxu0 0.0
    %1237 = vmatprep.subr.mxu0 0.0
    %1238 = vmatpush1.xpose.msra.mxu0 0.0
    %1239 = vmatprep.subr.mxu0 0.0
    %1240 = vmatpush1.xpose.msra.mxu0 0.0
    %1241 = vmatprep.subr.mxu0 0.0
    %1242 = vmatpush1.xpose.msra.mxu0 0.0
    %1243 = vmatprep.subr.mxu0 0.0
    %1244 = vmatpush1.xpose.msra.mxu0 0.0
    %1245 = vmatprep.subr.mxu0 0.0
    %1246 = vmatpush1.xpose.msra.mxu0 0.0
    %1247 = vmatprep.subr.mxu0 0.0
    %1248 = vmatpush1.xpose.msra.mxu0 0.0
    %1249 = vmatprep.subr.mxu0 0.0
    %1250 = vmatpush1.xpose.msra.mxu0 0.0
    %1251 = vmatprep.subr.mxu0 0.0
    %1252 = vmatpush1.xpose.msra.mxu0 0.0
    %1253 = vmatprep.subr.mxu0 0.0
    %1254 = vmatpush1.xpose.msra.mxu0 0.0
    %1255 = vmatprep.subr.mxu0 0.0
    %1256 = vmatpush1.xpose.msra.mxu0 0.0
    %1257 = vmatprep.subr.mxu0 0.0
    %1258 = vmatpush1.xpose.msra.mxu0 0.0
    %1259 = vmatprep.subr.mxu0 0.0
    %1260 = vmatpush1.xpose.msra.mxu0 0.0
    %1261 = vmatprep.subr.mxu0 0.0
    %1262 = vmatpush1.xpose.msra.mxu0 0.0
    %1263 = vmatprep.subr.mxu0 0.0
    %1264 = vmatpush1.xpose.msra.mxu0 0.0
    %1265 = vmatprep.subr.mxu0 0.0
    %1266 = vmatpush1.xpose.msra.mxu0 0.0
    %1267 = vmatprep.subr.mxu0 0.0
    %1268 = vmatpush1.xpose.msra.mxu0 0.0
    %1269 = vmatprep.subr.mxu0 0.0
    %1270 = vmatpush1.xpose.msra.mxu0 0.0
    %1271 = vmatprep.subr.mxu0 0.0
    %1272 = vmatpush1.xpose.msra.mxu0 0.0
    %1273 = vmatprep.subr.mxu0 0.0
    %1274 = vmatpush1.xpose.msra.mxu0 0.0
    %1275 = vmatprep.subr.mxu0 0.0
    %1276 = vmatpush1.xpose.msra.mxu0 0.0
    %1277 = vmatprep.subr.mxu0 0.0
    %1278 = vmatpush1.xpose.msra.mxu0 0.0
    %1279 = vmatprep.subr.mxu0 0.0
    %1280 = vmatpush1.xpose.msra.mxu0 0.0
    %1281 = vmatprep.subr.mxu0 0.0
    %1282 = vmatpush1.xpose.msra.mxu0 0.0
    %1283 = vmatprep.subr.mxu0 0.0
    %1284 = vmatpush1.xpose.msra.mxu0 0.0
    %1285 = vmatprep.subr.mxu0 0.0
    %1286 = vmatpush1.xpose.msra.mxu0 0.0
    %1287 = vmatprep.subr.mxu0 0.0
    %1288 = vmatpush1.xpose.msra.mxu0 0.0
    %1289 = vmatprep.subr.mxu0 0.0
    %1290 = vmatpush1.xpose.msra.mxu0 0.0
    %1291 = vmatprep.subr.mxu0 0.0
    %1292 = vmatpush1.xpose.msra.mxu0 0.0
    %1293 = vmatprep.subr.mxu0 0.0
    %1294 = vmatpush1.xpose.msra.mxu0 0.0
    %1295 = vmatprep.mubr.f32.mxu0 0.0
    %1296 = vmatmul.mubr.f32.gmra.mrb[0].mxu0 %v1229
    %v1297 = vpop.f32.mrb[0].mxu0
    %v1298 = vadd.f32 0.0, %v1297
    %v1299 = vpop.f32.mrb[0].mxu0
    %1300 = vdwg.mxu0
    %v1302 = vsel %vm63, %v1227, 0
    %1304 = vmatprep.subr.mxu0 0.0
    %1305 = vmatpush1.xpose.msra.mxu0 %v291
    %1306 = vmatprep.subr.mxu0 0.0
    %1307 = vmatpush1.xpose.msra.mxu0 0.0
    %1308 = vmatprep.subr.mxu0 0.0
    %1309 = vmatpush1.xpose.msra.mxu0 0.0
    %1310 = vmatprep.subr.mxu0 0.0
    %1311 = vmatpush1.xpose.msra.mxu0 0.0
    %1312 = vmatprep.subr.mxu0 0.0
    %1313 = vmatpush1.xpose.msra.mxu0 0.0
    %1314 = vmatprep.subr.mxu0 0.0
    %1315 = vmatpush1.xpose.msra.mxu0 0.0
    %1316 = vmatprep.subr.mxu0 0.0
    %1317 = vmatpush1.xpose.msra.mxu0 0.0
    %1318 = vmatprep.subr.mxu0 0.0
    %1319 = vmatpush1.xpose.msra.mxu0 0.0
    %1320 = vmatprep.subr.mxu0 0.0
    %1321 = vmatpush1.xpose.msra.mxu0 0.0
    %1322 = vmatprep.subr.mxu0 0.0
    %1323 = vmatpush1.xpose.msra.mxu0 0.0
    %1324 = vmatprep.subr.mxu0 0.0
    %1325 = vmatpush1.xpose.msra.mxu0 0.0
    %1326 = vmatprep.subr.mxu0 0.0
    %1327 = vmatpush1.xpose.msra.mxu0 0.0
    %1328 = vmatprep.subr.mxu0 0.0
    %1329 = vmatpush1.xpose.msra.mxu0 0.0
    %1330 = vmatprep.subr.mxu0 0.0
    %1331 = vmatpush1.xpose.msra.mxu0 0.0
    %1332 = vmatprep.subr.mxu0 0.0
    %1333 = vmatpush1.xpose.msra.mxu0 0.0
    %1334 = vmatprep.subr.mxu0 0.0
    %1335 = vmatpush1.xpose.msra.mxu0 0.0
    %1336 = vmatprep.subr.mxu0 0.0
    %1337 = vmatpush1.xpose.msra.mxu0 0.0
    %1338 = vmatprep.subr.mxu0 0.0
    %1339 = vmatpush1.xpose.msra.mxu0 0.0
    %1340 = vmatprep.subr.mxu0 0.0
    %1341 = vmatpush1.xpose.msra.mxu0 0.0
    %1342 = vmatprep.subr.mxu0 0.0
    %1343 = vmatpush1.xpose.msra.mxu0 0.0
    %1344 = vmatprep.subr.mxu0 0.0
    %1345 = vmatpush1.xpose.msra.mxu0 0.0
    %1346 = vmatprep.subr.mxu0 0.0
    %1347 = vmatpush1.xpose.msra.mxu0 0.0
    %1348 = vmatprep.subr.mxu0 0.0
    %1349 = vmatpush1.xpose.msra.mxu0 0.0
    %1350 = vmatprep.subr.mxu0 0.0
    %1351 = vmatpush1.xpose.msra.mxu0 0.0
    %1352 = vmatprep.subr.mxu0 0.0
    %1353 = vmatpush1.xpose.msra.mxu0 0.0
    %1354 = vmatprep.subr.mxu0 0.0
    %1355 = vmatpush1.xpose.msra.mxu0 0.0
    %1356 = vmatprep.subr.mxu0 0.0
    %1357 = vmatpush1.xpose.msra.mxu0 0.0
    %1358 = vmatprep.subr.mxu0 0.0
    %1359 = vmatpush1.xpose.msra.mxu0 0.0
    %1360 = vmatprep.subr.mxu0 0.0
    %1361 = vmatpush1.xpose.msra.mxu0 0.0
    %1362 = vmatprep.subr.mxu0 0.0
    %1363 = vmatpush1.xpose.msra.mxu0 0.0
    %1364 = vmatprep.subr.mxu0 0.0
    %1365 = vmatpush1.xpose.msra.mxu0 0.0
    %1366 = vmatprep.subr.mxu0 0.0
    %1367 = vmatpush1.xpose.msra.mxu0 0.0
    %1368 = vmatprep.mubr.f32.mxu0 0.0
    %1369 = vmatmul.mubr.f32.gmra.mrb[0].mxu0 %v1302
    %v1370 = vpop.f32.mrb[0].mxu0
    %v1371 = vadd.f32 0.0, %v1370
    %v1372 = vpop.f32.mrb[0].mxu0
    %1373 = vdwg.mxu0
    %v1374 = vmul.f32 %v1298, 0.35355338
    %v1375 = vmul.f32 %v1371, 0.35355338
    %v1376 = vsel %vm365, %v1374, -inf
    %1377 = vmax.xlane.f32.xlu0 %v1376
    %v1378 = vpop.xlane.xlu0 %1377
    %v1379 = vsel %vm365, %v1375, -inf
    %1380 = vmax.xlane.f32.xlu0 %v1379
    %v1381 = vpop.xlane.xlu0 %1380
    %v1382 = vsub.f32 %v1374, %v1378
    %v1383 = vsub.f32 %v1375, %v1381
    %v1384 = vmul.f32 %v1382, 1.442695
    %v1385 = vpow.pop %v1384
    %v1386 = vmul.f32 %v1383, 1.442695
    %v1387 = vpow.pop %v1386
    %v1388 = vsel %vm365, %v1385, 0.0
    %1389 = vadd.xlane.f32.xlu0 %v1388
    %v1390 = vpop.xlane.xlu0 %1389
    %v1391 = vsel %vm365, %v1387, 0.0
    %1392 = vadd.xlane.f32.xlu0 %v1391
    %v1393 = vpop.xlane.xlu0 %1392
    %v1394 = vrcp.pop %v1390
    %v1395 = vrcp.pop %v1393
    %v1396 = vmul.f32 %v1385, %v1394
    %v1397 = vmul.f32 %v1387, %v1395
    %1399 = vrot.lane.b32.xlu0 %v1225, 64
    %v1400 = vpop.permute.xlu0 %1399
    %v1402 = vmul.f32 %v191, %v1400
    %v1403 = vmul.f32 %v196, %v1400
    %1405 = vrot.lane.b32.xlu0 %v1402, 64
    %v1406 = vpop.permute.xlu0 %1405
    %v1409 = vsel %vm365, %v1396, 0
    %1411 = vmatprep.subr.mxu0 0.0
    %1412 = vmatpush1.msra.mxu0 %v1406
    %1413 = vmatprep.subr.mxu0 0.0
    %1414 = vmatpush1.msra.mxu0 0.0
    %1415 = vmatprep.subr.mxu0 0.0
    %1416 = vmatpush1.msra.mxu0 0.0
    %1417 = vmatprep.subr.mxu0 0.0
    %1418 = vmatpush1.msra.mxu0 0.0
    %1419 = vmatprep.subr.mxu0 0.0
    %1420 = vmatpush1.msra.mxu0 0.0
    %1421 = vmatprep.subr.mxu0 0.0
    %1422 = vmatpush1.msra.mxu0 0.0
    %1423 = vmatprep.subr.mxu0 0.0
    %1424 = vmatpush1.msra.mxu0 0.0
    %1425 = vmatprep.subr.mxu0 0.0
    %1426 = vmatpush1.msra.mxu0 0.0
    %1427 = vmatprep.subr.mxu0 0.0
    %1428 = vmatpush1.msra.mxu0 0.0
    %1429 = vmatprep.subr.mxu0 0.0
    %1430 = vmatpush1.msra.mxu0 0.0
    %1431 = vmatprep.subr.mxu0 0.0
    %1432 = vmatpush1.msra.mxu0 0.0
    %1433 = vmatprep.subr.mxu0 0.0
    %1434 = vmatpush1.msra.mxu0 0.0
    %1435 = vmatprep.subr.mxu0 0.0
    %1436 = vmatpush1.msra.mxu0 0.0
    %1437 = vmatprep.subr.mxu0 0.0
    %1438 = vmatpush1.msra.mxu0 0.0
    %1439 = vmatprep.subr.mxu0 0.0
    %1440 = vmatpush1.msra.mxu0 0.0
    %1441 = vmatprep.subr.mxu0 0.0
    %1442 = vmatpush1.msra.mxu0 0.0
    %1443 = vmatprep.subr.mxu0 0.0
    %1444 = vmatpush1.msra.mxu0 0.0
    %1445 = vmatprep.subr.mxu0 0.0
    %1446 = vmatpush1.msra.mxu0 0.0
    %1447 = vmatprep.subr.mxu0 0.0
    %1448 = vmatpush1.msra.mxu0 0.0
    %1449 = vmatprep.subr.mxu0 0.0
    %1450 = vmatpush1.msra.mxu0 0.0
    %1451 = vmatprep.subr.mxu0 0.0
    %1452 = vmatpush1.msra.mxu0 0.0
    %1453 = vmatprep.subr.mxu0 0.0
    %1454 = vmatpush1.msra.mxu0 0.0
    %1455 = vmatprep.subr.mxu0 0.0
    %1456 = vmatpush1.msra.mxu0 0.0
    %1457 = vmatprep.subr.mxu0 0.0
    %1458 = vmatpush1.msra.mxu0 0.0
    %1459 = vmatprep.subr.mxu0 0.0
    %1460 = vmatpush1.msra.mxu0 0.0
    %1461 = vmatprep.subr.mxu0 0.0
    %1462 = vmatpush1.msra.mxu0 0.0
    %1463 = vmatprep.subr.mxu0 0.0
    %1464 = vmatpush1.msra.mxu0 0.0
    %1465 = vmatprep.subr.mxu0 0.0
    %1466 = vmatpush1.msra.mxu0 0.0
    %1467 = vmatprep.subr.mxu0 0.0
    %1468 = vmatpush1.msra.mxu0 0.0
    %1469 = vmatprep.subr.mxu0 0.0
    %1470 = vmatpush1.msra.mxu0 0.0
    %1471 = vmatprep.subr.mxu0 0.0
    %1472 = vmatpush1.msra.mxu0 0.0
    %1473 = vmatprep.subr.mxu0 0.0
    %1474 = vmatpush1.msra.mxu0 0.0
    %1475 = vmatprep.mubr.f32.mxu0 0.0
    %1476 = vmatmul.mubr.f32.gmra.mrb[0].mxu0 %v1409
    %v1477 = vpop.f32.mrb[0].mxu0
    %v1478 = vadd.f32 0.0, %v1477
    %v1479 = vpop.f32.mrb[0].mxu0
    %1480 = vdwg.mxu0
    %1482 = vrot.lane.b32.xlu0 %v1403, 64
    %v1483 = vpop.permute.xlu0 %1482
    %v1486 = vsel %vm365, %v1397, 0
    %1488 = vmatprep.subr.mxu0 0.0
    %1489 = vmatpush1.msra.mxu0 %v1483
    %1490 = vmatprep.subr.mxu0 0.0
    %1491 = vmatpush1.msra.mxu0 0.0
    %1492 = vmatprep.subr.mxu0 0.0
    %1493 = vmatpush1.msra.mxu0 0.0
    %1494 = vmatprep.subr.mxu0 0.0
    %1495 = vmatpush1.msra.mxu0 0.0
    %1496 = vmatprep.subr.mxu0 0.0
    %1497 = vmatpush1.msra.mxu0 0.0
    %1498 = vmatprep.subr.mxu0 0.0
    %1499 = vmatpush1.msra.mxu0 0.0
    %1500 = vmatprep.subr.mxu0 0.0
    %1501 = vmatpush1.msra.mxu0 0.0
    %1502 = vmatprep.subr.mxu0 0.0
    %1503 = vmatpush1.msra.mxu0 0.0
    %1504 = vmatprep.subr.mxu0 0.0
    %1505 = vmatpush1.msra.mxu0 0.0
    %1506 = vmatprep.subr.mxu0 0.0
    %1507 = vmatpush1.msra.mxu0 0.0
    %1508 = vmatprep.subr.mxu0 0.0
    %1509 = vmatpush1.msra.mxu0 0.0
    %1510 = vmatprep.subr.mxu0 0.0
    %1511 = vmatpush1.msra.mxu0 0.0
    %1512 = vmatprep.subr.mxu0 0.0
    %1513 = vmatpush1.msra.mxu0 0.0
    %1514 = vmatprep.subr.mxu0 0.0
    %1515 = vmatpush1.msra.mxu0 0.0
    %1516 = vmatprep.subr.mxu0 0.0
    %1517 = vmatpush1.msra.mxu0 0.0
    %1518 = vmatprep.subr.mxu0 0.0
    %1519 = vmatpush1.msra.mxu0 0.0
    %1520 = vmatprep.subr.mxu0 0.0
    %1521 = vmatpush1.msra.mxu0 0.0
    %1522 = vmatprep.subr.mxu0 0.0
    %1523 = vmatpush1.msra.mxu0 0.0
    %1524 = vmatprep.subr.mxu0 0.0
    %1525 = vmatpush1.msra.mxu0 0.0
    %1526 = vmatprep.subr.mxu0 0.0
    %1527 = vmatpush1.msra.mxu0 0.0
    %1528 = vmatprep.subr.mxu0 0.0
    %1529 = vmatpush1.msra.mxu0 0.0
    %1530 = vmatprep.subr.mxu0 0.0
    %1531 = vmatpush1.msra.mxu0 0.0
    %1532 = vmatprep.subr.mxu0 0.0
    %1533 = vmatpush1.msra.mxu0 0.0
    %1534 = vmatprep.subr.mxu0 0.0
    %1535 = vmatpush1.msra.mxu0 0.0
    %1536 = vmatprep.subr.mxu0 0.0
    %1537 = vmatpush1.msra.mxu0 0.0
    %1538 = vmatprep.subr.mxu0 0.0
    %1539 = vmatpush1.msra.mxu0 0.0
    %1540 = vmatprep.subr.mxu0 0.0
    %1541 = vmatpush1.msra.mxu0 0.0
    %1542 = vmatprep.subr.mxu0 0.0
    %1543 = vmatpush1.msra.mxu0 0.0
    %1544 = vmatprep.subr.mxu0 0.0
    %1545 = vmatpush1.msra.mxu0 0.0
    %1546 = vmatprep.subr.mxu0 0.0
    %1547 = vmatpush1.msra.mxu0 0.0
    %1548 = vmatprep.subr.mxu0 0.0
    %1549 = vmatpush1.msra.mxu0 0.0
    %1550 = vmatprep.subr.mxu0 0.0
    %1551 = vmatpush1.msra.mxu0 0.0
    %1552 = vmatprep.mubr.f32.mxu0 0.0
    %1553 = vmatmul.mubr.f32.gmra.mrb[0].mxu0 %v1486
    %v1554 = vpop.f32.mrb[0].mxu0
    %v1555 = vadd.f32 0.0, %v1554
    %v1556 = vpop.f32.mrb[0].mxu0
    %1557 = vdwg.mxu0
    %v1558 = vadd.f32 %v1220, %v1478
    %v1559 = vadd.f32 %v1221, %v1555
    %v1560 = vld [vmem:[%s5] sm:$0xff]
    %v1561 = vld [vmem:[%s5 + $0x8] sm:$0xff]
    %v1562 = vld [vmem:[%s5 + $0x10] sm:$0xff]
    %v1563 = vld [vmem:[%s5 + $0x18] sm:$0xff]
    %v1564 = vld [vmem:[%s6] sm:$0x1]
    %v1566 = vlaneseq
    %v1567 = vshrl.u32 %v1566, 7
    %v1568 = vsub.s32 0, %v1567
    %v1569 = vrot.slane %v1564, %v1568
    %v1572 = vsel %vm63, %v1558, 0
    %v1575 = vsel %vm63, %v1559, 0
    %1577 = vmatprep.subr.mxu0 0.0
    %1578 = vmatpush1.msra.mxu0 %v1560
    %1579 = vmatprep.subr.mxu0 0.0
    %1580 = vmatpush1.msra.mxu0 %v1561
    %1581 = vmatprep.subr.mxu0 0.0
    %1582 = vmatpush1.msra.mxu0 %v1562
    %1583 = vmatprep.subr.mxu0 0.0
    %1584 = vmatpush1.msra.mxu0 %v1563
    %1585 = vmatprep.subr.mxu0 0.0
    %1586 = vmatpush1.msra.mxu0 0.0
    %1587 = vmatprep.subr.mxu0 0.0
    %1588 = vmatpush1.msra.mxu0 0.0
    %1589 = vmatprep.subr.mxu0 0.0
    %1590 = vmatpush1.msra.mxu0 0.0
    %1591 = vmatprep.subr.mxu0 0.0
    %1592 = vmatpush1.msra.mxu0 0.0
    %1593 = vmatprep.subr.mxu0 0.0
    %1594 = vmatpush1.msra.mxu0 0.0
    %1595 = vmatprep.subr.mxu0 0.0
    %1596 = vmatpush1.msra.mxu0 0.0
    %1597 = vmatprep.subr.mxu0 0.0
    %1598 = vmatpush1.msra.mxu0 0.0
    %1599 = vmatprep.subr.mxu0 0.0
    %1600 = vmatpush1.msra.mxu0 0.0
    %1601 = vmatprep.subr.mxu0 0.0
    %1602 = vmatpush1.msra.mxu0 0.0
    %1603 = vmatprep.subr.mxu0 0.0
    %1604 = vmatpush1.msra.mxu0 0.0
    %1605 = vmatprep.subr.mxu0 0.0
    %1606 = vmatpush1.msra.mxu0 0.0
    %1607 = vmatprep.subr.mxu0 0.0
    %1608 = vmatpush1.msra.mxu0 0.0
    %1609 = vmatprep.subr.mxu0 0.0
    %1610 = vmatpush1.msra.mxu0 0.0
    %1611 = vmatprep.subr.mxu0 0.0
    %1612 = vmatpush1.msra.mxu0 0.0
    %1613 = vmatprep.subr.mxu0 0.0
    %1614 = vmatpush1.msra.mxu0 0.0
    %1615 = vmatprep.subr.mxu0 0.0
    %1616 = vmatpush1.msra.mxu0 0.0
    %1617 = vmatprep.subr.mxu0 0.0
    %1618 = vmatpush1.msra.mxu0 0.0
    %1619 = vmatprep.subr.mxu0 0.0
    %1620 = vmatpush1.msra.mxu0 0.0
    %1621 = vmatprep.subr.mxu0 0.0
    %1622 = vmatpush1.msra.mxu0 0.0
    %1623 = vmatprep.subr.mxu0 0.0
    %1624 = vmatpush1.msra.mxu0 0.0
    %1625 = vmatprep.subr.mxu0 0.0
    %1626 = vmatpush1.msra.mxu0 0.0
    %1627 = vmatprep.subr.mxu0 0.0
    %1628 = vmatpush1.msra.mxu0 0.0
    %1629 = vmatprep.subr.mxu0 0.0
    %1630 = vmatpush1.msra.mxu0 0.0
    %1631 = vmatprep.subr.mxu0 0.0
    %1632 = vmatpush1.msra.mxu0 0.0
    %1633 = vmatprep.subr.mxu0 0.0
    %1634 = vmatpush1.msra.mxu0 0.0
    %1635 = vmatprep.subr.mxu0 0.0
    %1636 = vmatpush1.msra.mxu0 0.0
    %1637 = vmatprep.subr.mxu0 0.0
    %1638 = vmatpush1.msra.mxu0 0.0
    %1639 = vmatprep.subr.mxu0 0.0
    %1640 = vmatpush1.msra.mxu0 0.0
    %1641 = vmatprep.mubr.f32.mxu0 0.0
    %1642 = vmatmul.mubr.f32.gmra.mrb[0].mxu0 %v1572
    %v1643 = vpop.f32.mrb[0].mxu0
    %v1644 = vadd.f32 %v1569, %v1643
    %v1645 = vpop.f32.mrb[0].mxu0
    %1646 = vmatprep.mubr.f32.mxu0 0.0
    %1647 = vmatmul.mubr.f32.gmra.mrb[0].mxu0 %v1575
    %v1648 = vpop.f32.mrb[0].mxu0
    %v1649 = vadd.f32 %v1569, %v1648
    %v1650 = vpop.f32.mrb[0].mxu0
    %1651 = vdwg.mxu0
    %v1652 = vadd.f32 %v59, %v1644
    %v1653 = vadd.f32 %v60, %v1649
    %v1654 = vld [vmem:[%s7] sm:$0x1]
    %v1655 = vld [vmem:[%s8] sm:$0x1]
    %v1656 = vsel %vm63, %v1652, 0.0
    %1657 = vadd.xlane.f32.xlu0 %v1656
    %v1658 = vpop.xlane.xlu0 %1657
    %v1659 = vsel %vm63, %v1653, 0.0
    %1660 = vadd.xlane.f32.xlu0 %v1659
    %v1661 = vpop.xlane.xlu0 %1660
    %v1662 = vmul.f32 %v1658, %v70
    %v1663 = vmul.f32 %v1661, %v70
    %v1664 = vsub.f32 %v1652, %v1662
    %v1665 = vsub.f32 %v1653, %v1663
    %v1666 = vmul.f32 %v1664, %v1664
    %v1667 = vmul.f32 %v1665, %v1665
    %v1668 = vsel %vm63, %v1666, 0.0
    %1669 = vadd.xlane.f32.xlu0 %v1668
    %v1670 = vpop.xlane.xlu0 %1669
    %v1671 = vsel %vm63, %v1667, 0.0
    %1672 = vadd.xlane.f32.xlu0 %v1671
    %v1673 = vpop.xlane.xlu0 %1672
    %v1674 = vmul.f32 %v1670, %v70
    %v1675 = vmul.f32 %v1673, %v70
    %v1676 = vadd.f32 %v1674, 1e-05
    %v1677 = vadd.f32 %v1675, 1e-05
    %v1678 = vrsqrt.pop %v1676
    %v1679 = vrsqrt.pop %v1677
    %v1680 = vmul.f32 %v1664, %v1678
    %v1681 = vmul.f32 %v1665, %v1679
    %v1683 = vlaneseq
    %v1684 = vshrl.u32 %v1683, 7
    %v1685 = vsub.s32 0, %v1684
    %v1686 = vrot.slane %v1654, %v1685
    %v1688 = vmul.f32 %v1680, %v1686
    %v1689 = vmul.f32 %v1681, %v1686
    %v1691 = vlaneseq
    %v1692 = vshrl.u32 %v1691, 7
    %v1693 = vsub.s32 0, %v1692
    %v1694 = vrot.slane %v1655, %v1693
    %v1696 = vadd.f32 %v1688, %v1694
    %v1697 = vadd.f32 %v1689, %v1694
    %v1698 = vld [vmem:[%s9] sm:$0xff]
    %v1699 = vld [vmem:[%s9 + $0x8] sm:$0xff]
    %v1700 = vld [vmem:[%s9 + $0x10] sm:$0xff]
    %v1701 = vld [vmem:[%s9 + $0x18] sm:$0xff]
    %v1702 = vld [vmem:[%s10] sm:$0x1]
    %v1704 = vlaneseq
    %v1705 = vshrl.u32 %v1704, 7
    %v1706 = vsub.s32 0, %v1705
    %v1707 = vrot.slane %v1702, %v1706
    %v1710 = vsel %vm63, %v1696, 0
    %v1713 = vsel %vm63, %v1697, 0
    %1715 = vmatprep.subr.mxu0 0.0
    %1716 = vmatpush1.msra.mxu0 %v1698
    %1717 = vmatprep.subr.mxu0 0.0
    %1718 = vmatpush1.msra.mxu0 %v1699
    %1719 = vmatprep.subr.mxu0 0.0
    %1720 = vmatpush1.msra.mxu0 %v1700
    %1721 = vmatprep.subr.mxu0 0.0
    %1722 = vmatpush1.msra.mxu0 %v1701
    %1723 = vmatprep.subr.mxu0 0.0
    %1724 = vmatpush1.msra.mxu0 0.0
    %1725 = vmatprep.subr.mxu0 0.0
    %1726 = vmatpush1.msra.mxu0 0.0
    %1727 = vmatprep.subr.mxu0 0.0
    %1728 = vmatpush1.msra.mxu0 0.0
    %1729 = vmatprep.subr.mxu0 0.0
    %1730 = vmatpush1.msra.mxu0 0.0
    %1731 = vmatprep.subr.mxu0 0.0
    %1732 = vmatpush1.msra.mxu0 0.0
    %1733 = vmatprep.subr.mxu0 0.0
    %1734 = vmatpush1.msra.mxu0 0.0
    %1735 = vmatprep.subr.mxu0 0.0
    %1736 = vmatpush1.msra.mxu0 0.0
    %1737 = vmatprep.subr.mxu0 0.0
    %1738 = vmatpush1.msra.mxu0 0.0
    %1739 = vmatprep.subr.mxu0 0.0
    %1740 = vmatpush1.msra.mxu0 0.0
    %1741 = vmatprep.subr.mxu0 0.0
    %1742 = vmatpush1.msra.mxu0 0.0
    %1743 = vmatprep.subr.mxu0 0.0
    %1744 = vmatpush1.msra.mxu0 0.0
    %1745 = vmatprep.subr.mxu0 0.0
    %1746 = vmatpush1.msra.mxu0 0.0
    %1747 = vmatprep.subr.mxu0 0.0
    %1748 = vmatpush1.msra.mxu0 0.0
    %1749 = vmatprep.subr.mxu0 0.0
    %1750 = vmatpush1.msra.mxu0 0.0
    %1751 = vmatprep.subr.mxu0 0.0
    %1752 = vmatpush1.msra.mxu0 0.0
    %1753 = vmatprep.subr.mxu0 0.0
    %1754 = vmatpush1.msra.mxu0 0.0
    %1755 = vmatprep.subr.mxu0 0.0
    %1756 = vmatpush1.msra.mxu0 0.0
    %1757 = vmatprep.subr.mxu0 0.0
    %1758 = vmatpush1.msra.mxu0 0.0
    %1759 = vmatprep.subr.mxu0 0.0
    %1760 = vmatpush1.msra.mxu0 0.0
    %1761 = vmatprep.subr.mxu0 0.0
    %1762 = vmatpush1.msra.mxu0 0.0
    %1763 = vmatprep.subr.mxu0 0.0
    %1764 = vmatpush1.msra.mxu0 0.0
    %1765 = vmatprep.subr.mxu0 0.0
    %1766 = vmatpush1.msra.mxu0 0.0
    %1767 = vmatprep.subr.mxu0 0.0
    %1768 = vmatpush1.msra.mxu0 0.0
    %1769 = vmatprep.subr.mxu0 0.0
    %1770 = vmatpush1.msra.mxu0 0.0
    %1771 = vmatprep.subr.mxu0 0.0
    %1772 = vmatpush1.msra.mxu0 0.0
    %1773 = vmatprep.subr.mxu0 0.0
    %1774 = vmatpush1.msra.mxu0 0.0
    %1775 = vmatprep.subr.mxu0 0.0
    %1776 = vmatpush1.msra.mxu0 0.0
    %1777 = vmatprep.subr.mxu0 0.0
    %1778 = vmatpush1.msra.mxu0 0.0
    %1779 = vmatprep.mubr.f32.mxu0 0.0
    %1780 = vmatmul.mubr.f32.gmra.mrb[0].mxu0 %v1710
    %v1781 = vpop.f32.mrb[0].mxu0
    %v1782 = vadd.f32 %v1707, %v1781
    %v1783 = vpop.f32.mrb[0].mxu0
    %1784 = vmatprep.mubr.f32.mxu0 0.0
    %1785 = vmatmul.mubr.f32.gmra.mrb[0].mxu0 %v1713
    %v1786 = vpop.f32.mrb[0].mxu0
    %v1787 = vadd.f32 %v1707, %v1786
    %v1788 = vpop.f32.mrb[0].mxu0
    %1789 = vdwg.mxu0
    %v1790 = vmax.f32 %v1782, 0.0
    %v1791 = vmax.f32 %v1787, 0.0
    %v1792 = vld [vmem:[%s11] sm:$0xff]
    %v1793 = vld [vmem:[%s11 + $0x8] sm:$0xff]
    %v1794 = vld [vmem:[%s11 + $0x10] sm:$0xff]
    %v1795 = vld [vmem:[%s11 + $0x18] sm:$0xff]
    %v1796 = vld [vmem:[%s11 + $0x20] sm:$0xff]
    %v1797 = vld [vmem:[%s11 + $0x28] sm:$0xff]
    %v1798 = vld [vmem:[%s11 + $0x30] sm:$0xff]
    %v1799 = vld [vmem:[%s11 + $0x38] sm:$0xff]
    %v1800 = vld [vmem:[%s12] sm:$0x1]
    %v1802 = vlaneseq
    %v1803 = vshrl.u32 %v1802, 7
    %v1804 = vsub.s32 0, %v1803
    %v1805 = vrot.slane %v1800, %v1804
    %vm1807 = vcmask 523264
    %v1809 = vsel %vm1807, %v1790, 0
    %v1812 = vsel %vm1807, %v1791, 0
    %1814 = vmatprep.subr.mxu0 0.0
    %1815 = vmatpush1.msra.mxu0 %v1792
    %1816 = vmatprep.subr.mxu0 0.0
    %1817 = vmatpush1.msra.mxu0 %v1793
    %1818 = vmatprep.subr.mxu0 0.0
    %1819 = vmatpush1.msra.mxu0 %v1794
    %1820 = vmatprep.subr.mxu0 0.0
    %1821 = vmatpush1.msra.mxu0 %v1795
    %1822 = vmatprep.subr.mxu0 0.0
    %1823 = vmatpush1.msra.mxu0 %v1796
    %1824 = vmatprep.subr.mxu0 0.0
    %1825 = vmatpush1.msra.mxu0 %v1797
    %1826 = vmatprep.subr.mxu0 0.0
    %1827 = vmatpush1.msra.mxu0 %v1798
    %1828 = vmatprep.subr.mxu0 0.0
    %1829 = vmatpush1.msra.mxu0 %v1799
    %1830 = vmatprep.subr.mxu0 0.0
    %1831 = vmatpush1.msra.mxu0 0.0
    %1832 = vmatprep.subr.mxu0 0.0
    %1833 = vmatpush1.msra.mxu0 0.0
    %1834 = vmatprep.subr.mxu0 0.0
    %1835 = vmatpush1.msra.mxu0 0.0
    %1836 = vmatprep.subr.mxu0 0.0
    %1837 = vmatpush1.msra.mxu0 0.0
    %1838 = vmatprep.subr.mxu0 0.0
    %1839 = vmatpush1.msra.mxu0 0.0
    %1840 = vmatprep.subr.mxu0 0.0
    %1841 = vmatpush1.msra.mxu0 0.0
    %1842 = vmatprep.subr.mxu0 0.0
    %1843 = vmatpush1.msra.mxu0 0.0
    %1844 = vmatprep.subr.mxu0 0.0
    %1845 = vmatpush1.msra.mxu0 0.0
    %1846 = vmatprep.subr.mxu0 0.0
    %1847 = vmatpush1.msra.mxu0 0.0
    %1848 = vmatprep.subr.mxu0 0.0
    %1849 = vmatpush1.msra.mxu0 0.0
    %1850 = vmatprep.subr.mxu0 0.0
    %1851 = vmatpush1.msra.mxu0 0.0
    %1852 = vmatprep.subr.mxu0 0.0
    %1853 = vmatpush1.msra.mxu0 0.0
    %1854 = vmatprep.subr.mxu0 0.0
    %1855 = vmatpush1.msra.mxu0 0.0
    %1856 = vmatprep.subr.mxu0 0.0
    %1857 = vmatpush1.msra.mxu0 0.0
    %1858 = vmatprep.subr.mxu0 0.0
    %1859 = vmatpush1.msra.mxu0 0.0
    %1860 = vmatprep.subr.mxu0 0.0
    %1861 = vmatpush1.msra.mxu0 0.0
    %1862 = vmatprep.subr.mxu0 0.0
    %1863 = vmatpush1.msra.mxu0 0.0
    %1864 = vmatprep.subr.mxu0 0.0
    %1865 = vmatpush1.msra.mxu0 0.0
    %1866 = vmatprep.subr.mxu0 0.0
    %1867 = vmatpush1.msra.mxu0 0.0
    %1868 = vmatprep.subr.mxu0 0.0
    %1869 = vmatpush1.msra.mxu0 0.0
    %1870 = vmatprep.subr.mxu0 0.0
    %1871 = vmatpush1.msra.mxu0 0.0
    %1872 = vmatprep.subr.mxu0 0.0
    %1873 = vmatpush1.msra.mxu0 0.0
    %1874 = vmatprep.subr.mxu0 0.0
    %1875 = vmatpush1.msra.mxu0 0.0
    %1876 = vmatprep.subr.mxu0 0.0
    %1877 = vmatpush1.msra.mxu0 0.0
    %1878 = vmatprep.mubr.f32.mxu0 0.0
    %1879 = vmatmul.mubr.f32.gmra.mrb[0].mxu0 %v1809
    %v1880 = vpop.f32.mrb[0].mxu0
    %v1881 = vadd.f32 %v1805, %v1880
    %v1882 = vpop.f32.mrb[0].mxu0
    %1883 = vmatprep.mubr.f32.mxu0 0.0
    %1884 = vmatmul.mubr.f32.gmra.mrb[0].mxu0 %v1812
    %v1885 = vpop.f32.mrb[0].mxu0
    %v1886 = vadd.f32 %v1805, %v1885
    %v1887 = vpop.f32.mrb[0].mxu0
    %1888 = vdwg.mxu0
    %v1889 = vadd.f32 %v1652, %v1881
    %v1890 = vadd.f32 %v1653, %v1886
    %1891 = vst.msk [vmem:[#allocation5] sm:$0xff] %vm63, %v1889
    %1892 = vst.msk [vmem:[#allocation5 + $0x8] sm:$0xff] %vm63, %v1890
    // Predicated region
    $region58: #{tpu_custom_call.1} parent=1 // pred_check
      _
    $region59: #{tpu_custom_call.1} parent=1 // pred_check_branch
      %1894 = sbr.rel (0) target = $region61
    $region60: #{tpu_custom_call.1} parent=1 // pred_region
      %s1896 = ssub.s32 256, 256
      %1897 = vsyncadd [#allocation4], %s1896
      %s1898 = sshll.u32 [#allocation5], 4
      %s1899 = int_to_ptr.vmem [resolvable:$true] %s1898
      %1904 = dma.vmem_to_hbm [thread:$0]  %s1899, 256, %s13, [#allocation4], 128, 128, 8
    $region61: #{tpu_custom_call.1} parent=1 // pred_fallthru
      _
    // Predicated region
    $region62: #{tpu_custom_call.1} parent=1 // pred_check
      _
    $region63: #{tpu_custom_call.1} parent=1 // pred_check_branch
      %1906 = sbr.rel (0) target = $region65
    $region64: #{tpu_custom_call.1} parent=1 // pred_region
      %1907 = dma.done [#allocation4], 256
    $region65: #{tpu_custom_call.1} parent=1 // pred_fallthru
      _
    %1908 = vsyncpa [#allocation3], 1
    %1909 = vsyncpa [#allocation4], 1

</llo_original>
